<compile_context>
chip_gen: v5e
topology: v5e:2x2
jax: 0.10.0
libtpu: 0.0.40
codegen_flags: <defaults>
</compile_context>

<pallas_src>
import functools

import jax
import jax.numpy as jnp
from jax.experimental import pallas as pl
from jax.experimental.pallas import tpu as pltpu

_EPS = 0.0   # GINConv default eps (untrained)


def _round_up(v, m):
    return (v + m - 1) // m * m


def _pick_tiles(n_p):
    # Row tile: keep >= 2 row tiles when possible so the "parallel" axis shards across
    # v7x's two TensorCores; 256-row tiles help feed the 2x256 MXUs on v6e/v7x.
    tm = 256 if (n_p % 256 == 0 and n_p // 256 >= 2) else 128
    # Reduction (source) panel width: wider -> fewer grid steps; must divide n_p.
    tk = 128
    for cand in (512, 256):
        if n_p % cand == 0:
            tk = cand
            break
    return tm, tk


# --------------------------------------------------------------------------------------
# GIN layer kernel.
#   out_rows = MLP( sum_{nonzero src blocks b} A[row_tile, b] @ X[b] )
# (the (1+eps)*x_i self term is already folded into A's diagonal by the wrapper)
# --------------------------------------------------------------------------------------
def _gin_layer_kernel(blk_ref, cnt_ref, a_ref, x_ref, w1_ref, b1_ref, w2_ref, b2_ref,
                      out_ref, acc_ref, *, tk, nbk, apply_relu):
    i = pl.program_id(0)
    k = pl.program_id(1)

    @pl.when(k == 0)
    def _():
        acc_ref[...] = jnp.zeros_like(acc_ref)

    # Accumulate only over panels that contain at least one edge (block-sparse skip).
    @pl.when(k < cnt_ref[i])
    def _():
        b = blk_ref[i * nbk + k]                       # nonzero source block id (SMEM)
        start = pl.multiple_of(b * tk, tk)
        xs = x_ref[pl.ds(start, tk), :]                # (tk, Cin) slice of resident X
        acc_ref[...] += jnp.dot(a_ref[...], xs, preferred_element_type=jnp.float32)

    @pl.when(k == pl.num_programs(1) - 1)
    def _():
        t = acc_ref[...]                                                  # (TM, Cin) f32
        h = jnp.dot(t.astype(jnp.bfloat16), w1_ref[...],
                    preferred_element_type=jnp.float32) + b1_ref[...]     # (TM, H)
        h = jnp.maximum(h, 0.0)                                           # MLP internal ReLU (f32)
        z = jnp.dot(h.astype(jnp.bfloat16), w2_ref[...],
                    preferred_element_type=jnp.float32) + b2_ref[...]     # (TM, Cout)
        if apply_relu:                                                    # inter-layer ReLU
            z = jnp.maximum(z, 0.0)
        out_ref[...] = z.astype(out_ref.dtype)


def gin_layer(blk_ids, counts, adj16, x16, w1t, b1, w2t, b2, *,
              apply_relu, out_dtype, tm, tk):
    """One GINConv (+ optional trailing ReLU). Inputs already padded / pre-transposed.

    blk_ids: (nbr*nbk,) int32 compacted nonzero source-block ids per row tile (padded by
             repeating the last valid id so consecutive grid steps re-use the same DMA)
    counts : (nbr,) int32 number of nonzero source blocks per row tile (>= 1, diag included)
    adj16  : (Np, Np) bf16 sum-aggregation matrix with (1+eps) folded onto the diagonal
    x16    : (Np, Cin) bf16 node features (held fully VMEM-resident)
    w1t    : (Cin, H)  bf16 first  MLP weight, already transposed to (in, out)
    w2t    : (H, Cout) bf16 second MLP weight, already transposed to (in, out)
    b1/b2  : (1, H) / (1, Cout) f32 biases
    """
    n_p = adj16.shape[0]
    cin = x16.shape[1]
    h = w1t.shape[1]
    cout = w2t.shape[1]
    nbr, nbk = n_p // tm, n_p // tk

    # TODO(synk): for very large Np*Cin (> a few tens of MiB) fall back to streamed (tk, Cin)
    # feature panels instead of a fully resident X (v7x has 64 MiB physical VMEM).

    flops = 2 * n_p * n_p * cin + 2 * n_p * cin * h + 2 * n_p * h * cout
    bytes_accessed = (n_p * n_p * 2 + n_p * cin * 2 + cin * h * 2 + h * cout * 2
                      + (h + cout) * 4 + n_p * cout * jnp.dtype(out_dtype).itemsize)

    kernel = functools.partial(_gin_layer_kernel, tk=tk, nbk=nbk, apply_relu=apply_relu)

    return pl.pallas_call(
        kernel,
        out_shape=jax.ShapeDtypeStruct((n_p, cout), out_dtype),
        grid_spec=pltpu.PrefetchScalarGridSpec(
            num_scalar_prefetch=2,                          # blk_ids, counts -> SMEM
            grid=(nbr, nbk),
            in_specs=[
                # A panel: column block chosen from the compacted nonzero-block list.
                pl.BlockSpec((tm, tk), lambda i, k, blk, cnt: (i, blk[i * nbk + k])),
                # X fully resident (constant index_map -> DMA'd once), sliced in-kernel.
                pl.BlockSpec((n_p, cin), lambda i, k, blk, cnt: (0, 0)),
                pl.BlockSpec((cin, h), lambda i, k, blk, cnt: (0, 0)),    # W1^T (resident)
                pl.BlockSpec((1, h), lambda i, k, blk, cnt: (0, 0)),      # b1
                pl.BlockSpec((h, cout), lambda i, k, blk, cnt: (0, 0)),   # W2^T (resident)
                pl.BlockSpec((1, cout), lambda i, k, blk, cnt: (0, 0)),   # b2
            ],
            out_specs=pl.BlockSpec((tm, cout), lambda i, k, blk, cnt: (i, 0)),
            scratch_shapes=[pltpu.VMEM((tm, cin), jnp.float32)],
        ),
        compiler_params=pltpu.CompilerParams(
            # row tiles independent (megacore / v7x 2-TC sharding); source axis = reduction
            dimension_semantics=("parallel", "arbitrary"),
            vmem_limit_bytes=32 * 1024 * 1024,
        ),
        cost_estimate=pl.CostEstimate(flops=flops, transcendentals=0,
                                      bytes_accessed=int(bytes_accessed)),
    )(blk_ids, counts, adj16, x16, w1t, b1, w2t, b2)


# --------------------------------------------------------------------------------------
# Inner-product decoder kernel: z resident in VMEM, indices scalar-prefetched into SMEM,
# rows gathered in-kernel (dynamic sublane slices), lane-dense (1, TE) output row.
# --------------------------------------------------------------------------------------
def _decode_kernel(src_ref, dst_ref, z_ref, out_ref, zs_scr, zd_scr):
    eb = pl.program_id(0)
    te = out_ref.shape[1]
    base = eb * te

    @pl.loop(0, te)
    def _(j):
        s = src_ref[base + j]
        d = dst_ref[base + j]
        zs_scr[pl.ds(j, 1), :] = z_ref[pl.ds(s, 1), :]
        zd_scr[pl.ds(j, 1), :] = z_ref[pl.ds(d, 1), :]

    prod = zs_scr[...] * zd_scr[...]                     # (TE, Cp) f32
    out_ref[...] = jnp.sum(prod, axis=1)[None, :]        # (1, TE) lane-dense store


def decode_inner_product(z, src_idx, dst_idx):
    """InnerProductDecoder (sigmoid=False): out[e] = <z[src_e], z[dst_e]>."""
    e = src_idx.shape[0]
    n_p, cp = z.shape

    # Wide edge tile (single block when E is small) -> few grid steps, unmasked stores.
    te = min(_round_up(max(e, 1), 128), 1024)
    e_pad = _round_up(max(e, 1), te)

    src_p = jnp.zeros((e_pad,), jnp.int32).at[:e].set(src_idx.astype(jnp.int32))
    dst_p = jnp.zeros((e_pad,), jnp.int32).at[:e].set(dst_idx.astype(jnp.int32))

    # TODO(synk): for very large N (z no longer VMEM-resident) switch to a DMA row gather.
    out = pl.pallas_call(
        _decode_kernel,
        out_shape=jax.ShapeDtypeStruct((1, e_pad), jnp.float32),
        grid_spec=pltpu.PrefetchScalarGridSpec(
            num_scalar_prefetch=2,                               # src, dst indices -> SMEM
            grid=(e_pad // te,),
            in_specs=[pl.BlockSpec((n_p, cp), lambda eb, s, d: (0, 0))],   # z resident
            out_specs=pl.BlockSpec((1, te), lambda eb, s, d: (0, eb)),
            scratch_shapes=[pltpu.VMEM((te, cp), jnp.float32),
                            pltpu.VMEM((te, cp), jnp.float32)],
        ),
        compiler_params=pltpu.CompilerParams(
            dimension_semantics=("parallel",),
            vmem_limit_bytes=32 * 1024 * 1024,
        ),
    )(src_p, dst_p, z)
    return out[0, :e]                   # matches `.view(-1)` in the PyTorch forward


# --------------------------------------------------------------------------------------
# Full forward: padding / layout / sparsity-metadata plumbing in plain JAX,
# all compute in the Pallas kernels.
# --------------------------------------------------------------------------------------
def linkgin_forward(x, edge_index, edge_label_index, params):
    n, c_in = x.shape
    hid = params["w1a"].shape[0]
    c_out = params["w2a"].shape[0]

    n_p = _round_up(n, 128)
    tm, tk = _pick_tiles(n_p)
    cin_p = _round_up(c_in, 128)
    hid_p = _round_up(hid, 128)
    cout_p = _round_up(c_out, 128)

    # Sum-aggregation adjacency (GIN 'add' aggregation, counts multi-edges) with the
    # (1+eps) self term folded onto the diagonal. Small-int valued -> bf16 cast is exact.
    src, dst = edge_index[0], edge_index[1]
    adj = jnp.zeros((n_p, n_p), jnp.float32).at[dst, src].add(1.0)
    diag = jnp.arange(n_p)
    adj = adj.at[diag, diag].add(1.0 + _EPS)
    adj16 = adj.astype(jnp.bfloat16)

    # Block-sparsity metadata shared by both layers: per row tile, a compacted ascending
    # list of nonzero (tm, tk) source blocks + counts. The diagonal guarantees counts >= 1.
    nbr, nbk = n_p // tm, n_p // tk
    has = adj.reshape(nbr, tm, nbk, tk).sum(axis=(1, 3)) > 0.0           # (nbr, nbk) bool
    counts = has.sum(axis=1).astype(jnp.int32)                           # (nbr,)
    col = jnp.arange(nbk, dtype=jnp.int32)
    order = jnp.argsort(jnp.where(has, col[None, :], nbk), axis=1).astype(jnp.int32)
    last = jnp.take_along_axis(order, jnp.maximum(counts - 1, 0)[:, None], axis=1)
    blk_ids = jnp.where(col[None, :] < counts[:, None], order, last)     # pad = repeat last
    blk_ids = blk_ids.reshape(-1).astype(jnp.int32)                      # flat (nbr*nbk,)

    # Single bf16 feature operand (the exact-f32 self-term input is no longer needed).
    x16 = jnp.zeros((n_p, cin_p), jnp.bfloat16).at[:n, :c_in].set(x.astype(jnp.bfloat16))

    # Pre-transpose PyTorch-layout (out, in) weights to (in, out), zero-pad to lane
    # multiples, cast matmul operands to bf16 (biases stay f32).
    def pad_w(w, in_p, out_p):
        wt = jnp.zeros((in_p, out_p), jnp.float32).at[:w.shape[1], :w.shape[0]].set(w.T)
        return wt.astype(jnp.bfloat16)

    def pad_b(b, out_p):
        return jnp.zeros((1, out_p), jnp.float32).at[0, :b.shape[0]].set(b)

    w1a = pad_w(params["w1a"], cin_p, hid_p); b1a = pad_b(params["b1a"], hid_p)
    w1b = pad_w(params["w1b"], hid_p, hid_p); b1b = pad_b(params["b1b"], hid_p)
    w2a = pad_w(params["w2a"], hid_p, cout_p); b2a = pad_b(params["b2a"], cout_p)
    w2b = pad_w(params["w2b"], cout_p, cout_p); b2b = pad_b(params["b2b"], cout_p)

    # Layer 1: GINConv(MLP[in->hid->hid]) + BasicGNN inter-layer ReLU. Emits bf16 directly
    # so layer 2 consumes it without an XLA-side cast / extra HBM round trip.
    h1_16 = gin_layer(blk_ids, counts, adj16, x16, w1a, b1a, w1b, b1b,
                      apply_relu=True, out_dtype=jnp.bfloat16, tm=tm, tk=tk)
    # Layer 2: GINConv(MLP[hid->out->out]), no activation after the last conv; f32 out
    # for the decoder.
    z = gin_layer(blk_ids, counts, adj16, h1_16, w2a, b2a, w2b, b2b,
                  apply_relu=False, out_dtype=jnp.float32, tm=tm, tk=tk)

    # Note: padded node rows of z equal MLP(0) (bias-propagated), but padded adjacency
    # columns are zero and the decoder only gathers real indices, so they never leak.
    return decode_inner_product(z, edge_label_index[0], edge_label_index[1])


# --------------------------------------------------------------------------------------
# Pure-JAX reference (matmul_dtype=float32 -> exact PyTorch math;
#                     matmul_dtype=bfloat16 -> mirrors the kernel's mixed precision,
#                     including the self term riding the bf16 aggregation matmul)
# --------------------------------------------------------------------------------------
def linkgin_reference(x, edge_index, edge_label_index, params, matmul_dtype=jnp.float32):
    n = x.shape[0]
    src, dst = edge_index[0], edge_index[1]
    adj = jnp.zeros((n, n), jnp.float32).at[dst, src].add(1.0)
    adj = adj.at[jnp.arange(n), jnp.arange(n)].add(1.0 + _EPS)   # self term folded in

    def mm(a, b):
        return jnp.dot(a.astype(matmul_dtype), b.astype(matmul_dtype),
                       preferred_element_type=jnp.float32)

    def gin_conv(h, wa, ba, wb, bb):
        t = mm(adj, h)                                   # sum agg incl. (1+eps)*x_root
        m = jax.nn.relu(mm(t, wa.T) + ba)
        return mm(m, wb.T) + bb

    h1 = jax.nn.relu(gin_conv(x, params["w1a"], params["b1a"], params["w1b"], params["b1b"]))
    z = gin_conv(h1, params["w2a"], params["b2a"], params["w2b"], params["b2b"])
    zs = z[edge_label_index[0]]
    zd = z[edge_label_index[1]]
    return jnp.sum(zs * zd, axis=1)


if __name__ == "__main__":
    # Small, deterministic problem sizes (pads to Np=256 -> 2 row tiles x 1 source block).
    N = 200
    C_IN = 12
    HID = 32
    C_OUT = 16
    NUM_EDGES = 400
    NUM_LABEL_EDGES = 37

    key = jax.random.PRNGKey(0)
    keys = jax.random.split(key, 11)

    x = jax.random.normal(keys[0], (N, C_IN), dtype=jnp.float32)
    edge_index = jax.random.randint(keys[1], (2, NUM_EDGES), 0, N, dtype=jnp.int32)
    edge_label_index = jax.random.randint(keys[2], (2, NUM_LABEL_EDGES), 0, N, dtype=jnp.int32)

    # GINConv MLP parameters in PyTorch (out_features, in_features) layout, biases in both linears.
    params = {
        "w1a": 0.1 * jax.random.normal(keys[3], (HID, C_IN), jnp.float32),
        "b1a": 0.1 * jax.random.normal(keys[4], (HID,), jnp.float32),
        "w1b": 0.1 * jax.random.normal(keys[5], (HID, HID), jnp.float32),
        "b1b": 0.1 * jax.random.normal(keys[6], (HID,), jnp.float32),
        "w2a": 0.1 * jax.random.normal(keys[7], (C_OUT, HID), jnp.float32),
        "b2a": 0.1 * jax.random.normal(keys[8], (C_OUT,), jnp.float32),
        "w2b": 0.1 * jax.random.normal(keys[9], (C_OUT, C_OUT), jnp.float32),
        "b2b": 0.1 * jax.random.normal(keys[10], (C_OUT,), jnp.float32),
    }

    fwd = jax.jit(linkgin_forward)
    out = jax.block_until_ready(fwd(x, edge_index, edge_label_index, params))
    assert out.shape == (NUM_LABEL_EDGES,)

    # Tight check against a reference that mirrors the kernel's bf16-operand / f32-acc math.
    ref_mixed = linkgin_reference(x, edge_index, edge_label_index, params,
                                  matmul_dtype=jnp.bfloat16)
    assert jnp.allclose(out, ref_mixed, atol=1e-2, rtol=1e-2), (out, ref_mixed)

    # Loose sanity check against the exact f32 PyTorch semantics (bf16 rounding only).
    ref_f32 = linkgin_reference(x, edge_index, edge_label_index, params,
                                matmul_dtype=jnp.float32)
    assert jnp.allclose(out, ref_f32, atol=1e-1, rtol=1e-1), (out, ref_f32)

    print("KERNEL_OK")
</pallas_src>

<mosaic_0001>
module attributes {stable_mosaic.version = 11 : i64} {
  func.func @_gin_layer_kernel(%arg0: i32, %arg1: i32, %arg2: memref<2xi32, #tpu.memory_space<smem>>, %arg3: memref<2xi32, #tpu.memory_space<smem>>, %arg4: memref<128x256xbf16, #tpu.memory_space<vmem>>, %arg5: memref<256x128xbf16, #tpu.memory_space<vmem>>, %arg6: memref<128x128xbf16, #tpu.memory_space<vmem>>, %arg7: memref<1x128xf32, #tpu.memory_space<vmem>>, %arg8: memref<128x128xbf16, #tpu.memory_space<vmem>>, %arg9: memref<1x128xf32, #tpu.memory_space<vmem>>, %arg10: memref<128x128xbf16, #tpu.memory_space<vmem>>, %arg11: memref<128x128xf32, #tpu.memory_space<vmem>>) attributes {dimension_semantics = [#tpu.dimension_semantics<parallel>, #tpu.dimension_semantics<arbitrary>], iteration_bounds = array<i64: 2, 1>, scalar_prefetch = 2 : i64, scratch_operands = 1 : i64, tpu.core_type = #tpu.core_type<tc>, window_params = [{transform_indices = @transform_0, window_bounds = array<i64: 128, 256>}, {pipeline_mode = #tpu.pipeline_mode<synchronous>, transform_indices = @transform_1, window_bounds = array<i64: 256, 128>}, {pipeline_mode = #tpu.pipeline_mode<synchronous>, transform_indices = @transform_2, window_bounds = array<i64: 128, 128>}, {pipeline_mode = #tpu.pipeline_mode<synchronous>, transform_indices = @transform_3, window_bounds = array<i64: 1, 128>}, {pipeline_mode = #tpu.pipeline_mode<synchronous>, transform_indices = @transform_4, window_bounds = array<i64: 128, 128>}, {pipeline_mode = #tpu.pipeline_mode<synchronous>, transform_indices = @transform_5, window_bounds = array<i64: 1, 128>}, {transform_indices = @transform_6, window_bounds = array<i64: 128, 128>}]} {
    %c0_i32 = arith.constant 0 : i32
    %0 = arith.cmpi eq, %arg1, %c0_i32 : i32
    %1 = arith.extui %0 : i1 to i32
    %c0_i32_0 = arith.constant 0 : i32
    %2 = arith.cmpi ne, %1, %c0_i32_0 : i32
    scf.if %2 {
      %cst = arith.constant 0.000000e+00 : f32
      %11 = vector.broadcast %cst : f32 to vector<128x128xf32>
      %c0 = arith.constant 0 : index
      %c0_4 = arith.constant 0 : index
      %12 = vector.load %arg11[%c0, %c0_4] : memref<128x128xf32, #tpu.memory_space<vmem>>, vector<128x128xf32>
      tpu.vector_store %arg11[%c0, %c0_4], %11 {strides = array<i32>} : memref<128x128xf32, #tpu.memory_space<vmem>>, vector<128x128xf32>,
    } else {
    }
    %3 = arith.index_cast %arg0 : i32 to index
    %4 = memref.load %arg3[%3] : memref<2xi32, #tpu.memory_space<smem>>
    %5 = arith.cmpi slt, %arg1, %4 : i32
    %6 = arith.extui %5 : i1 to i32
    %c0_i32_1 = arith.constant 0 : i32
    %7 = arith.cmpi ne, %6, %c0_i32_1 : i32
    scf.if %7 {
      %c1_i32 = arith.constant 1 : i32
      %11 = arith.muli %arg0, %c1_i32 : i32
      %12 = arith.addi %11, %arg1 : i32
      %13 = arith.index_cast %12 : i32 to index
      %14 = memref.load %arg2[%13] : memref<2xi32, #tpu.memory_space<smem>>
      %c256_i32 = arith.constant 256 : i32
      %15 = arith.muli %14, %c256_i32 : i32
      %16 = tpu.assume_multiple %15, 256 : i32
      %17 = arith.index_cast %16 : i32 to index
      %c0 = arith.constant 0 : index
      %18 = vector.load %arg5[%17, %c0] : memref<256x128xbf16, #tpu.memory_space<vmem>>, vector<256x128xbf16>
      %c0_4 = arith.constant 0 : index
      %c0_5 = arith.constant 0 : index
      %19 = vector.load %arg11[%c0_4, %c0_5] : memref<128x128xf32, #tpu.memory_space<vmem>>, vector<128x128xf32>
      %c0_6 = arith.constant 0 : index
      %c0_7 = arith.constant 0 : index
      %20 = vector.load %arg4[%c0_6, %c0_7] : memref<128x256xbf16, #tpu.memory_space<vmem>>, vector<128x256xbf16>
      %cst = arith.constant dense<0.000000e+00> : vector<128x128xf32>
      %21 = tpu.matmul %20, %18, %cst {dimension_numbers = #tpu.dot_dimension_numbers<[1], [0], [0], [1], [0, 0, 1, 1], [], []>} : vector<128x256xbf16>, vector<256x128xbf16>, vector<128x128xf32> -> vector<128x128xf32>
      %22 = arith.addf %19, %21 : vector<128x128xf32>
      %c0_8 = arith.constant 0 : index
      %c0_9 = arith.constant 0 : index
      %23 = vector.load %arg11[%c0_8, %c0_9] : memref<128x128xf32, #tpu.memory_space<vmem>>, vector<128x128xf32>
      tpu.vector_store %arg11[%c0_8, %c0_9], %22 {strides = array<i32>} : memref<128x128xf32, #tpu.memory_space<vmem>>, vector<128x128xf32>,
    } else {
    }
    %c0_i32_2 = arith.constant 0 : i32
    %8 = arith.cmpi eq, %arg1, %c0_i32_2 : i32
    %9 = arith.extui %8 : i1 to i32
    %c0_i32_3 = arith.constant 0 : i32
    %10 = arith.cmpi ne, %9, %c0_i32_3 : i32
    scf.if %10 {
      %c0 = arith.constant 0 : index
      %c0_4 = arith.constant 0 : index
      %11 = vector.load %arg11[%c0, %c0_4] : memref<128x128xf32, #tpu.memory_space<vmem>>, vector<128x128xf32>
      %12 = arith.truncf %11 : vector<128x128xf32> to vector<128x128xbf16>
      %c0_5 = arith.constant 0 : index
      %c0_6 = arith.constant 0 : index
      %13 = vector.load %arg6[%c0_5, %c0_6] : memref<128x128xbf16, #tpu.memory_space<vmem>>, vector<128x128xbf16>
      %cst = arith.constant dense<0.000000e+00> : vector<128x128xf32>
      %14 = tpu.matmul %12, %13, %cst {dimension_numbers = #tpu.dot_dimension_numbers<[1], [0], [0], [1], [0, 0, 1, 1], [], []>} : vector<128x128xbf16>, vector<128x128xbf16>, vector<128x128xf32> -> vector<128x128xf32>
      %c0_7 = arith.constant 0 : index
      %c0_8 = arith.constant 0 : index
      %15 = vector.load %arg7[%c0_7, %c0_8] : memref<1x128xf32, #tpu.memory_space<vmem>>, vector<1x128xf32>
      %16 = vector.broadcast %15 : vector<1x128xf32> to vector<128x128xf32>
      %17 = arith.addf %14, %16 : vector<128x128xf32>
      %cst_9 = arith.constant 0.000000e+00 : f32
      %18 = vector.broadcast %cst_9 : f32 to vector<128x128xf32>
      %19 = arith.maximumf %17, %18 : vector<128x128xf32>
      %20 = arith.truncf %19 : vector<128x128xf32> to vector<128x128xbf16>
      %c0_10 = arith.constant 0 : index
      %c0_11 = arith.constant 0 : index
      %21 = vector.load %arg8[%c0_10, %c0_11] : memref<128x128xbf16, #tpu.memory_space<vmem>>, vector<128x128xbf16>
      %cst_12 = arith.constant dense<0.000000e+00> : vector<128x128xf32>
      %22 = tpu.matmul %20, %21, %cst_12 {dimension_numbers = #tpu.dot_dimension_numbers<[1], [0], [0], [1], [0, 0, 1, 1], [], []>} : vector<128x128xbf16>, vector<128x128xbf16>, vector<128x128xf32> -> vector<128x128xf32>
      %c0_13 = arith.constant 0 : index
      %c0_14 = arith.constant 0 : index
      %23 = vector.load %arg9[%c0_13, %c0_14] : memref<1x128xf32, #tpu.memory_space<vmem>>, vector<1x128xf32>
      %24 = vector.broadcast %23 : vector<1x128xf32> to vector<128x128xf32>
      %25 = arith.addf %22, %24 : vector<128x128xf32>
      %cst_15 = arith.constant 0.000000e+00 : f32
      %26 = vector.broadcast %cst_15 : f32 to vector<128x128xf32>
      %27 = arith.maximumf %25, %26 : vector<128x128xf32>
      %28 = arith.truncf %27 : vector<128x128xf32> to vector<128x128xbf16>
      %c0_16 = arith.constant 0 : index
      %c0_17 = arith.constant 0 : index
      %29 = vector.load %arg10[%c0_16, %c0_17] : memref<128x128xbf16, #tpu.memory_space<vmem>>, vector<128x128xbf16>
      tpu.vector_store %arg10[%c0_16, %c0_17], %28 {strides = array<i32>} : memref<128x128xbf16, #tpu.memory_space<vmem>>, vector<128x128xbf16>,
    } else {
    }
    return
  }
  func.func @transform_0(%arg0: i32, %arg1: i32, %arg2: memref<2xi32, #tpu.memory_space<smem>>, %arg3: memref<2xi32, #tpu.memory_space<smem>>) -> (i32, i32) {
    %c1_i32 = arith.constant 1 : i32
    %0 = arith.muli %arg0, %c1_i32 : i32
    %1 = arith.addi %0, %arg1 : i32
    %2 = arith.index_cast %1 : i32 to index
    %3 = memref.load %arg2[%2] : memref<2xi32, #tpu.memory_space<smem>>
    %c0_i32 = arith.constant 0 : i32
    return %arg0, %3 : i32, i32
  }
  func.func @transform_1(%arg0: i32, %arg1: i32, %arg2: memref<2xi32, #tpu.memory_space<smem>>, %arg3: memref<2xi32, #tpu.memory_space<smem>>) -> (i32, i32) {
    %c0_i32 = arith.constant 0 : i32
    %c0_i32_0 = arith.constant 0 : i32
    %c0_i32_1 = arith.constant 0 : i32
    return %c0_i32, %c0_i32_0 : i32, i32
  }
  func.func @transform_2(%arg0: i32, %arg1: i32, %arg2: memref<2xi32, #tpu.memory_space<smem>>, %arg3: memref<2xi32, #tpu.memory_space<smem>>) -> (i32, i32) {
    %c0_i32 = arith.constant 0 : i32
    %c0_i32_0 = arith.constant 0 : i32
    %c0_i32_1 = arith.constant 0 : i32
    return %c0_i32, %c0_i32_0 : i32, i32
  }
  func.func @transform_3(%arg0: i32, %arg1: i32, %arg2: memref<2xi32, #tpu.memory_space<smem>>, %arg3: memref<2xi32, #tpu.memory_space<smem>>) -> (i32, i32) {
    %c0_i32 = arith.constant 0 : i32
    %c0_i32_0 = arith.constant 0 : i32
    %c0_i32_1 = arith.constant 0 : i32
    return %c0_i32, %c0_i32_0 : i32, i32
  }
  func.func @transform_4(%arg0: i32, %arg1: i32, %arg2: memref<2xi32, #tpu.memory_space<smem>>, %arg3: memref<2xi32, #tpu.memory_space<smem>>) -> (i32, i32) {
    %c0_i32 = arith.constant 0 : i32
    %c0_i32_0 = arith.constant 0 : i32
    %c0_i32_1 = arith.constant 0 : i32
    return %c0_i32, %c0_i32_0 : i32, i32
  }
  func.func @transform_5(%arg0: i32, %arg1: i32, %arg2: memref<2xi32, #tpu.memory_space<smem>>, %arg3: memref<2xi32, #tpu.memory_space<smem>>) -> (i32, i32) {
    %c0_i32 = arith.constant 0 : i32
    %c0_i32_0 = arith.constant 0 : i32
    %c0_i32_1 = arith.constant 0 : i32
    return %c0_i32, %c0_i32_0 : i32, i32
  }
  func.func @transform_6(%arg0: i32, %arg1: i32, %arg2: memref<2xi32, #tpu.memory_space<smem>>, %arg3: memref<2xi32, #tpu.memory_space<smem>>) -> (i32, i32) {
    %c0_i32 = arith.constant 0 : i32
    %c0_i32_0 = arith.constant 0 : i32
    return %arg0, %c0_i32 : i32, i32
  }
}

module attributes {stable_mosaic.version = 11 : i64} {
  func.func @_decode_kernel(%arg0: i32, %arg1: memref<128xi32, #tpu.memory_space<smem>>, %arg2: memref<128xi32, #tpu.memory_space<smem>>, %arg3: memref<256x128xf32, #tpu.memory_space<vmem>>, %arg4: memref<1x128xf32, #tpu.memory_space<vmem>>, %arg5: memref<128x128xf32, #tpu.memory_space<vmem>>, %arg6: memref<128x128xf32, #tpu.memory_space<vmem>>) attributes {dimension_semantics = [#tpu.dimension_semantics<parallel>], iteration_bounds = array<i64: 1>, scalar_prefetch = 2 : i64, scratch_operands = 2 : i64, tpu.core_type = #tpu.core_type<tc>, window_params = [{pipeline_mode = #tpu.pipeline_mode<synchronous>, transform_indices = @transform_0, window_bounds = array<i64: 256, 128>}, {transform_indices = @transform_1, window_bounds = array<i64: 1, 128>}]} {
    %c128_i32 = arith.constant 128 : i32
    %0 = arith.muli %arg0, %c128_i32 : i32
    %c0_i32 = arith.constant 0 : i32
    %c128_i32_0 = arith.constant 128 : i32
    %1 = arith.addi %c0_i32, %c128_i32_0 : i32
    %c1_i32 = arith.constant 1 : i32
    scf.for %arg7 = %c0_i32 to %1 step %c1_i32  : i32 {
      %c1_i32_7 = arith.constant 1 : i32
      %8 = arith.muli %arg7, %c1_i32_7 : i32
      %c0_i32_8 = arith.constant 0 : i32
      %9 = arith.addi %c0_i32_8, %8 : i32
      %10 = arith.addi %0, %9 : i32
      %11 = arith.index_cast %10 : i32 to index
      %12 = memref.load %arg1[%11] : memref<128xi32, #tpu.memory_space<smem>>
      %13 = arith.addi %0, %9 : i32
      %14 = arith.index_cast %13 : i32 to index
      %15 = memref.load %arg2[%14] : memref<128xi32, #tpu.memory_space<smem>>
      %16 = arith.index_cast %12 : i32 to index
      %c0_9 = arith.constant 0 : index
      %17 = vector.load %arg3[%16, %c0_9] : memref<256x128xf32, #tpu.memory_space<vmem>>, vector<1x128xf32>
      %18 = arith.index_cast %9 : i32 to index
      %c0_10 = arith.constant 0 : index
      %19 = vector.load %arg5[%18, %c0_10] : memref<128x128xf32, #tpu.memory_space<vmem>>, vector<1x128xf32>
      tpu.vector_store %arg5[%18, %c0_10], %17 {strides = array<i32>} : memref<128x128xf32, #tpu.memory_space<vmem>>, vector<1x128xf32>,
      %20 = arith.index_cast %15 : i32 to index
      %c0_11 = arith.constant 0 : index
      %21 = vector.load %arg3[%20, %c0_11] : memref<256x128xf32, #tpu.memory_space<vmem>>, vector<1x128xf32>
      %22 = arith.index_cast %9 : i32 to index
      %c0_12 = arith.constant 0 : index
      %23 = vector.load %arg6[%22, %c0_12] : memref<128x128xf32, #tpu.memory_space<vmem>>, vector<1x128xf32>
      tpu.vector_store %arg6[%22, %c0_12], %21 {strides = array<i32>} : memref<128x128xf32, #tpu.memory_space<vmem>>, vector<1x128xf32>,
    }
    %c128_i32_1 = arith.constant 128 : i32
    %c0 = arith.constant 0 : index
    %c0_2 = arith.constant 0 : index
    %2 = vector.load %arg5[%c0, %c0_2] : memref<128x128xf32, #tpu.memory_space<vmem>>, vector<128x128xf32>
    %c0_3 = arith.constant 0 : index
    %c0_4 = arith.constant 0 : index
    %3 = vector.load %arg6[%c0_3, %c0_4] : memref<128x128xf32, #tpu.memory_space<vmem>>, vector<128x128xf32>
    %4 = arith.mulf %2, %3 : vector<128x128xf32>
    %cst = arith.constant dense<0.000000e+00> : vector<128xf32>
    %5 = vector.multi_reduction <add>, %4, %cst [1] : vector<128x128xf32> to vector<128xf32>
    %6 = vector.shape_cast %5 : vector<128xf32> to vector<1x128xf32>
    %c0_5 = arith.constant 0 : index
    %c0_6 = arith.constant 0 : index
    %7 = vector.load %arg4[%c0_5, %c0_6] : memref<1x128xf32, #tpu.memory_space<vmem>>, vector<1x128xf32>
    tpu.vector_store %arg4[%c0_5, %c0_6], %6 {strides = array<i32>} : memref<1x128xf32, #tpu.memory_space<vmem>>, vector<1x128xf32>,
    return
  }
  func.func @transform_0(%arg0: i32, %arg1: memref<128xi32, #tpu.memory_space<smem>>, %arg2: memref<128xi32, #tpu.memory_space<smem>>) -> (i32, i32) {
    %c0_i32 = arith.constant 0 : i32
    %c0_i32_0 = arith.constant 0 : i32
    %c0_i32_1 = arith.constant 0 : i32
    return %c0_i32, %c0_i32_0 : i32, i32
  }
  func.func @transform_1(%arg0: i32, %arg1: memref<128xi32, #tpu.memory_space<smem>>, %arg2: memref<128xi32, #tpu.memory_space<smem>>) -> (i32, i32) {
    %c0_i32 = arith.constant 0 : i32
    %c0_i32_0 = arith.constant 0 : i32
    return %c0_i32, %arg0 : i32, i32
  }
}

module attributes {stable_mosaic.version = 11 : i64} {
  func.func @_gin_layer_kernel(%arg0: i32, %arg1: i32, %arg2: memref<2xi32, #tpu.memory_space<smem>>, %arg3: memref<2xi32, #tpu.memory_space<smem>>, %arg4: memref<128x256xbf16, #tpu.memory_space<vmem>>, %arg5: memref<256x128xbf16, #tpu.memory_space<vmem>>, %arg6: memref<128x128xbf16, #tpu.memory_space<vmem>>, %arg7: memref<1x128xf32, #tpu.memory_space<vmem>>, %arg8: memref<128x128xbf16, #tpu.memory_space<vmem>>, %arg9: memref<1x128xf32, #tpu.memory_space<vmem>>, %arg10: memref<128x128xf32, #tpu.memory_space<vmem>>, %arg11: memref<128x128xf32, #tpu.memory_space<vmem>>) attributes {dimension_semantics = [#tpu.dimension_semantics<parallel>, #tpu.dimension_semantics<arbitrary>], iteration_bounds = array<i64: 2, 1>, scalar_prefetch = 2 : i64, scratch_operands = 1 : i64, tpu.core_type = #tpu.core_type<tc>, window_params = [{transform_indices = @transform_0, window_bounds = array<i64: 128, 256>}, {pipeline_mode = #tpu.pipeline_mode<synchronous>, transform_indices = @transform_1, window_bounds = array<i64: 256, 128>}, {pipeline_mode = #tpu.pipeline_mode<synchronous>, transform_indices = @transform_2, window_bounds = array<i64: 128, 128>}, {pipeline_mode = #tpu.pipeline_mode<synchronous>, transform_indices = @transform_3, window_bounds = array<i64: 1, 128>}, {pipeline_mode = #tpu.pipeline_mode<synchronous>, transform_indices = @transform_4, window_bounds = array<i64: 128, 128>}, {pipeline_mode = #tpu.pipeline_mode<synchronous>, transform_indices = @transform_5, window_bounds = array<i64: 1, 128>}, {transform_indices = @transform_6, window_bounds = array<i64: 128, 128>}]} {
    %c0_i32 = arith.constant 0 : i32
    %0 = arith.cmpi eq, %arg1, %c0_i32 : i32
    %1 = arith.extui %0 : i1 to i32
    %c0_i32_0 = arith.constant 0 : i32
    %2 = arith.cmpi ne, %1, %c0_i32_0 : i32
    scf.if %2 {
      %cst = arith.constant 0.000000e+00 : f32
      %11 = vector.broadcast %cst : f32 to vector<128x128xf32>
      %c0 = arith.constant 0 : index
      %c0_4 = arith.constant 0 : index
      %12 = vector.load %arg11[%c0, %c0_4] : memref<128x128xf32, #tpu.memory_space<vmem>>, vector<128x128xf32>
      tpu.vector_store %arg11[%c0, %c0_4], %11 {strides = array<i32>} : memref<128x128xf32, #tpu.memory_space<vmem>>, vector<128x128xf32>,
    } else {
    }
    %3 = arith.index_cast %arg0 : i32 to index
    %4 = memref.load %arg3[%3] : memref<2xi32, #tpu.memory_space<smem>>
    %5 = arith.cmpi slt, %arg1, %4 : i32
    %6 = arith.extui %5 : i1 to i32
    %c0_i32_1 = arith.constant 0 : i32
    %7 = arith.cmpi ne, %6, %c0_i32_1 : i32
    scf.if %7 {
      %c1_i32 = arith.constant 1 : i32
      %11 = arith.muli %arg0, %c1_i32 : i32
      %12 = arith.addi %11, %arg1 : i32
      %13 = arith.index_cast %12 : i32 to index
      %14 = memref.load %arg2[%13] : memref<2xi32, #tpu.memory_space<smem>>
      %c256_i32 = arith.constant 256 : i32
      %15 = arith.muli %14, %c256_i32 : i32
      %16 = tpu.assume_multiple %15, 256 : i32
      %17 = arith.index_cast %16 : i32 to index
      %c0 = arith.constant 0 : index
      %18 = vector.load %arg5[%17, %c0] : memref<256x128xbf16, #tpu.memory_space<vmem>>, vector<256x128xbf16>
      %c0_4 = arith.constant 0 : index
      %c0_5 = arith.constant 0 : index
      %19 = vector.load %arg11[%c0_4, %c0_5] : memref<128x128xf32, #tpu.memory_space<vmem>>, vector<128x128xf32>
      %c0_6 = arith.constant 0 : index
      %c0_7 = arith.constant 0 : index
      %20 = vector.load %arg4[%c0_6, %c0_7] : memref<128x256xbf16, #tpu.memory_space<vmem>>, vector<128x256xbf16>
      %cst = arith.constant dense<0.000000e+00> : vector<128x128xf32>
      %21 = tpu.matmul %20, %18, %cst {dimension_numbers = #tpu.dot_dimension_numbers<[1], [0], [0], [1], [0, 0, 1, 1], [], []>} : vector<128x256xbf16>, vector<256x128xbf16>, vector<128x128xf32> -> vector<128x128xf32>
      %22 = arith.addf %19, %21 : vector<128x128xf32>
      %c0_8 = arith.constant 0 : index
      %c0_9 = arith.constant 0 : index
      %23 = vector.load %arg11[%c0_8, %c0_9] : memref<128x128xf32, #tpu.memory_space<vmem>>, vector<128x128xf32>
      tpu.vector_store %arg11[%c0_8, %c0_9], %22 {strides = array<i32>} : memref<128x128xf32, #tpu.memory_space<vmem>>, vector<128x128xf32>,
    } else {
    }
    %c0_i32_2 = arith.constant 0 : i32
    %8 = arith.cmpi eq, %arg1, %c0_i32_2 : i32
    %9 = arith.extui %8 : i1 to i32
    %c0_i32_3 = arith.constant 0 : i32
    %10 = arith.cmpi ne, %9, %c0_i32_3 : i32
    scf.if %10 {
      %c0 = arith.constant 0 : index
      %c0_4 = arith.constant 0 : index
      %11 = vector.load %arg11[%c0, %c0_4] : memref<128x128xf32, #tpu.memory_space<vmem>>, vector<128x128xf32>
      %12 = arith.truncf %11 : vector<128x128xf32> to vector<128x128xbf16>
      %c0_5 = arith.constant 0 : index
      %c0_6 = arith.constant 0 : index
      %13 = vector.load %arg6[%c0_5, %c0_6] : memref<128x128xbf16, #tpu.memory_space<vmem>>, vector<128x128xbf16>
      %cst = arith.constant dense<0.000000e+00> : vector<128x128xf32>
      %14 = tpu.matmul %12, %13, %cst {dimension_numbers = #tpu.dot_dimension_numbers<[1], [0], [0], [1], [0, 0, 1, 1], [], []>} : vector<128x128xbf16>, vector<128x128xbf16>, vector<128x128xf32> -> vector<128x128xf32>
      %c0_7 = arith.constant 0 : index
      %c0_8 = arith.constant 0 : index
      %15 = vector.load %arg7[%c0_7, %c0_8] : memref<1x128xf32, #tpu.memory_space<vmem>>, vector<1x128xf32>
      %16 = vector.broadcast %15 : vector<1x128xf32> to vector<128x128xf32>
      %17 = arith.addf %14, %16 : vector<128x128xf32>
      %cst_9 = arith.constant 0.000000e+00 : f32
      %18 = vector.broadcast %cst_9 : f32 to vector<128x128xf32>
      %19 = arith.maximumf %17, %18 : vector<128x128xf32>
      %20 = arith.truncf %19 : vector<128x128xf32> to vector<128x128xbf16>
      %c0_10 = arith.constant 0 : index
      %c0_11 = arith.constant 0 : index
      %21 = vector.load %arg8[%c0_10, %c0_11] : memref<128x128xbf16, #tpu.memory_space<vmem>>, vector<128x128xbf16>
      %cst_12 = arith.constant dense<0.000000e+00> : vector<128x128xf32>
      %22 = tpu.matmul %20, %21, %cst_12 {dimension_numbers = #tpu.dot_dimension_numbers<[1], [0], [0], [1], [0, 0, 1, 1], [], []>} : vector<128x128xbf16>, vector<128x128xbf16>, vector<128x128xf32> -> vector<128x128xf32>
      %c0_13 = arith.constant 0 : index
      %c0_14 = arith.constant 0 : index
      %23 = vector.load %arg9[%c0_13, %c0_14] : memref<1x128xf32, #tpu.memory_space<vmem>>, vector<1x128xf32>
      %24 = vector.broadcast %23 : vector<1x128xf32> to vector<128x128xf32>
      %25 = arith.addf %22, %24 : vector<128x128xf32>
      %c0_15 = arith.constant 0 : index
      %c0_16 = arith.constant 0 : index
      %26 = vector.load %arg10[%c0_15, %c0_16] : memref<128x128xf32, #tpu.memory_space<vmem>>, vector<128x128xf32>
      tpu.vector_store %arg10[%c0_15, %c0_16], %25 {strides = array<i32>} : memref<128x128xf32, #tpu.memory_space<vmem>>, vector<128x128xf32>,
    } else {
    }
    return
  }
  func.func @transform_0(%arg0: i32, %arg1: i32, %arg2: memref<2xi32, #tpu.memory_space<smem>>, %arg3: memref<2xi32, #tpu.memory_space<smem>>) -> (i32, i32) {
    %c1_i32 = arith.constant 1 : i32
    %0 = arith.muli %arg0, %c1_i32 : i32
    %1 = arith.addi %0, %arg1 : i32
    %2 = arith.index_cast %1 : i32 to index
    %3 = memref.load %arg2[%2] : memref<2xi32, #tpu.memory_space<smem>>
    %c0_i32 = arith.constant 0 : i32
    return %arg0, %3 : i32, i32
  }
  func.func @transform_1(%arg0: i32, %arg1: i32, %arg2: memref<2xi32, #tpu.memory_space<smem>>, %arg3: memref<2xi32, #tpu.memory_space<smem>>) -> (i32, i32) {
    %c0_i32 = arith.constant 0 : i32
    %c0_i32_0 = arith.constant 0 : i32
    %c0_i32_1 = arith.constant 0 : i32
    return %c0_i32, %c0_i32_0 : i32, i32
  }
  func.func @transform_2(%arg0: i32, %arg1: i32, %arg2: memref<2xi32, #tpu.memory_space<smem>>, %arg3: memref<2xi32, #tpu.memory_space<smem>>) -> (i32, i32) {
    %c0_i32 = arith.constant 0 : i32
    %c0_i32_0 = arith.constant 0 : i32
    %c0_i32_1 = arith.constant 0 : i32
    return %c0_i32, %c0_i32_0 : i32, i32
  }
  func.func @transform_3(%arg0: i32, %arg1: i32, %arg2: memref<2xi32, #tpu.memory_space<smem>>, %arg3: memref<2xi32, #tpu.memory_space<smem>>) -> (i32, i32) {
    %c0_i32 = arith.constant 0 : i32
    %c0_i32_0 = arith.constant 0 : i32
    %c0_i32_1 = arith.constant 0 : i32
    return %c0_i32, %c0_i32_0 : i32, i32
  }
  func.func @transform_4(%arg0: i32, %arg1: i32, %arg2: memref<2xi32, #tpu.memory_space<smem>>, %arg3: memref<2xi32, #tpu.memory_space<smem>>) -> (i32, i32) {
    %c0_i32 = arith.constant 0 : i32
    %c0_i32_0 = arith.constant 0 : i32
    %c0_i32_1 = arith.constant 0 : i32
    return %c0_i32, %c0_i32_0 : i32, i32
  }
  func.func @transform_5(%arg0: i32, %arg1: i32, %arg2: memref<2xi32, #tpu.memory_space<smem>>, %arg3: memref<2xi32, #tpu.memory_space<smem>>) -> (i32, i32) {
    %c0_i32 = arith.constant 0 : i32
    %c0_i32_0 = arith.constant 0 : i32
    %c0_i32_1 = arith.constant 0 : i32
    return %c0_i32, %c0_i32_0 : i32, i32
  }
  func.func @transform_6(%arg0: i32, %arg1: i32, %arg2: memref<2xi32, #tpu.memory_space<smem>>, %arg3: memref<2xi32, #tpu.memory_space<smem>>) -> (i32, i32) {
    %c0_i32 = arith.constant 0 : i32
    %c0_i32_0 = arith.constant 0 : i32
    return %arg0, %c0_i32 : i32, i32
  }
}

</mosaic_0001>

<llo_original>
// kernel: linkgin_forward.5
$region0: #{linkgin_forward.5}
  #allocation0 [shape = 'u32[]', space=smem, size = 0x4, offset = 0x4, fixed_abs, tag = 'smem constant byte address 0x4 - core index']
  #allocation1 [shape = 'u32[72,128]{1,0:T(1,128)}', space=vmem, size = 0x9000, scoped, tag = 'internal scratch']
  #allocation2 [shape = 'f32[128,128]{1,0:T(8,128)}', space=vmem, size = 0x10000, scoped, tag = 'scratch operand']
  #allocation3 [shape = 'f32[128,128]{1,0:T(8,128)}', space=vmem, size = 0x10000, scoped, tag = 'scratch operand']
  #allocation4 [shape = 's32[1]{0}', space=sflag, size = 0x4, scoped, tag = 'scoped memory for linkgin_forward.5']
  #allocation5 [shape = 'u8[512]{0}', space=smem, size = 0x200, scoped, tag = 'prefetched SMEM operand 0']
  #allocation6 [shape = 'u8[512]{0}', space=smem, size = 0x200, scoped, tag = 'prefetched SMEM operand 1']
  %s0 = inlined_call_operand.vmem [shape: s32[128], index: 0, kind: input, shape index: {}]
  %s1 = inlined_call_operand.vmem [shape: s32[128], index: 1, kind: input, shape index: {}]
  %s2 = inlined_call_operand.vmem [shape: f32[256,128], index: 2, kind: input, shape index: {}]
  %s3 = inlined_call_operand.vmem [shape: f32[1,128], index: 3, kind: output, shape index: {}]
  %s4 = sld [smem:[#allocation0]]
  $region21: #{linkgin_forward.5} parent=0
    _
  %s6 = ssub.s32 1, %s4
  %s7 = scalar_select 0, %s6, %s4
  %s9 = sshll.u32 %s0, 4
  %s10 = int_to_ptr.vmem [resolvable:$true] %s9
  %12 = dma.vmem_to_smem %s10, 16, [#allocation5], [#allocation4]
  %s14 = sshll.u32 %s1, 4
  %s15 = int_to_ptr.vmem [resolvable:$true] %s14
  %17 = dma.vmem_to_smem %s15, 16, [#allocation6], [#allocation4]
  %19 = dma.done [#allocation4], 32
  %20 = sfence
  // Predicated region
  $region2: #{linkgin_forward.5} parent=0 // pred_check
    _
  $region3: #{linkgin_forward.5} parent=0 // pred_check_branch
    %22 = sbr.rel (0) target = $region5
  $region4: #{linkgin_forward.5} parent=0 // pred_region
    _
  $region5: #{linkgin_forward.5} parent=0 // pred_fallthru
    _
  %s23 = smul.u32 0, 128
  loop: start=0, step=1, limit=128
  $region6: #{linkgin_forward.5} parent=0 // loop_pre_header
    _
  $region7: #{linkgin_forward.5} parent=0 // loop_header
    %s25 = sphi 0, %s29
    %p26 = scmp.ge.s32.totalorder %s25, 128
  $region8: #{linkgin_forward.5} parent=0 // loop_header_branch
    %28 = sbr.rel (%p26) target = $region12
  $region9: #{linkgin_forward.5} parent=0 // loop_body
    %s30 = sadd.s32 %s23, %s25
    %s31 = sld [smem:[#allocation5 + %s30]]
    %s32 = sld [smem:[#allocation6 + %s30]]
    %s33 = scalar_lea.vmem %s2, %s31
    %v34 = vld [vmem:[%s33] sm:$0x1]
    %s35 = scalar_lea.vmem [#allocation2], %s25
    %36 = vst [vmem:[%s35] sm:$0x1] %v34
    %s37 = scalar_lea.vmem %s2, %s32
    %v38 = vld [vmem:[%s37] sm:$0x1]
    %s39 = scalar_lea.vmem [#allocation3], %s25
    %40 = vst [vmem:[%s39] sm:$0x1] %v38
  $region10: #{linkgin_forward.5} parent=0 // loop_footer
    %s29 = sadd.s32 1, %s25
  $region11: #{linkgin_forward.5} parent=0 // loop_footer_branch
    %24 = sbr.rel target = $region7
  $region12: #{linkgin_forward.5} parent=0 // loop_exit
    _
  %v41 = vld [vmem:[#allocation2] sm:$0xff]
  %v42 = vld [vmem:[#allocation2 + $0x8] sm:$0xff]
  %v43 = vld [vmem:[#allocation2 + $0x10] sm:$0xff]
  %v44 = vld [vmem:[#allocation2 + $0x18] sm:$0xff]
  %v45 = vld [vmem:[#allocation2 + $0x20] sm:$0xff]
  %v46 = vld [vmem:[#allocation2 + $0x28] sm:$0xff]
  %v47 = vld [vmem:[#allocation2 + $0x30] sm:$0xff]
  %v48 = vld [vmem:[#allocation2 + $0x38] sm:$0xff]
  %v49 = vld [vmem:[#allocation2 + $0x40] sm:$0xff]
  %v50 = vld [vmem:[#allocation2 + $0x48] sm:$0xff]
  %v51 = vld [vmem:[#allocation2 + $0x50] sm:$0xff]
  %v52 = vld [vmem:[#allocation2 + $0x58] sm:$0xff]
  %v53 = vld [vmem:[#allocation2 + $0x60] sm:$0xff]
  %v54 = vld [vmem:[#allocation2 + $0x68] sm:$0xff]
  %v55 = vld [vmem:[#allocation2 + $0x70] sm:$0xff]
  %v56 = vld [vmem:[#allocation2 + $0x78] sm:$0xff]
  %v57 = vld [vmem:[#allocation3] sm:$0xff]
  %v58 = vld [vmem:[#allocation3 + $0x8] sm:$0xff]
  %v59 = vld [vmem:[#allocation3 + $0x10] sm:$0xff]
  %v60 = vld [vmem:[#allocation3 + $0x18] sm:$0xff]
  %v61 = vld [vmem:[#allocation3 + $0x20] sm:$0xff]
  %v62 = vld [vmem:[#allocation3 + $0x28] sm:$0xff]
  %v63 = vld [vmem:[#allocation3 + $0x30] sm:$0xff]
  %v64 = vld [vmem:[#allocation3 + $0x38] sm:$0xff]
  %v65 = vld [vmem:[#allocation3 + $0x40] sm:$0xff]
  %v66 = vld [vmem:[#allocation3 + $0x48] sm:$0xff]
  %v67 = vld [vmem:[#allocation3 + $0x50] sm:$0xff]
  %v68 = vld [vmem:[#allocation3 + $0x58] sm:$0xff]
  %v69 = vld [vmem:[#allocation3 + $0x60] sm:$0xff]
  %v70 = vld [vmem:[#allocation3 + $0x68] sm:$0xff]
  %v71 = vld [vmem:[#allocation3 + $0x70] sm:$0xff]
  %v72 = vld [vmem:[#allocation3 + $0x78] sm:$0xff]
  %v73 = vmul.f32 %v41, %v57
  %v74 = vmul.f32 %v42, %v58
  %v75 = vmul.f32 %v43, %v59
  %v76 = vmul.f32 %v44, %v60
  %v77 = vmul.f32 %v45, %v61
  %v78 = vmul.f32 %v46, %v62
  %v79 = vmul.f32 %v47, %v63
  %v80 = vmul.f32 %v48, %v64
  %v81 = vmul.f32 %v49, %v65
  %v82 = vmul.f32 %v50, %v66
  %v83 = vmul.f32 %v51, %v67
  %v84 = vmul.f32 %v52, %v68
  %v85 = vmul.f32 %v53, %v69
  %v86 = vmul.f32 %v54, %v70
  %v87 = vmul.f32 %v55, %v71
  %v88 = vmul.f32 %v56, %v72
  %89 = vadd.xlane.f32.xlu0 %v73
  %v90 = vpop.xlane.xlu0 %89
  %91 = vadd.xlane.f32.xlu0 %v74
  %v92 = vpop.xlane.xlu0 %91
  %93 = vadd.xlane.f32.xlu0 %v75
  %v94 = vpop.xlane.xlu0 %93
  %95 = vadd.xlane.f32.xlu0 %v76
  %v96 = vpop.xlane.xlu0 %95
  %97 = vadd.xlane.f32.xlu0 %v77
  %v98 = vpop.xlane.xlu0 %97
  %99 = vadd.xlane.f32.xlu0 %v78
  %v100 = vpop.xlane.xlu0 %99
  %101 = vadd.xlane.f32.xlu0 %v79
  %v102 = vpop.xlane.xlu0 %101
  %103 = vadd.xlane.f32.xlu0 %v80
  %v104 = vpop.xlane.xlu0 %103
  %105 = vadd.xlane.f32.xlu0 %v81
  %v106 = vpop.xlane.xlu0 %105
  %107 = vadd.xlane.f32.xlu0 %v82
  %v108 = vpop.xlane.xlu0 %107
  %109 = vadd.xlane.f32.xlu0 %v83
  %v110 = vpop.xlane.xlu0 %109
  %111 = vadd.xlane.f32.xlu0 %v84
  %v112 = vpop.xlane.xlu0 %111
  %113 = vadd.xlane.f32.xlu0 %v85
  %v114 = vpop.xlane.xlu0 %113
  %115 = vadd.xlane.f32.xlu0 %v86
  %v116 = vpop.xlane.xlu0 %115
  %117 = vadd.xlane.f32.xlu0 %v87
  %v118 = vpop.xlane.xlu0 %117
  %119 = vadd.xlane.f32.xlu0 %v88
  %v120 = vpop.xlane.xlu0 %119
  %v137 = vlaneseq
  %v138 = vand.u32 %v137, 127
  %v139 = vperm.slane %v90, %v138
  %v140 = vadd.s32 %v138, 4294967288
  %v141 = vperm.slane %v92, %v140
  %vm142 = vcmask 130112
  %v143 = vsel %vm142, %v141, %v139
  %v144 = vadd.s32 %v138, 4294967280
  %v145 = vperm.slane %v94, %v144
  %vm146 = vcmask 195712
  %v147 = vsel %vm146, %v145, %v143
  %v148 = vadd.s32 %v138, 4294967272
  %v149 = vperm.slane %v96, %v148
  %vm150 = vcmask 261312
  %v151 = vsel %vm150, %v149, %v147
  %v152 = vadd.s32 %v138, 4294967264
  %v153 = vperm.slane %v98, %v152
  %vm154 = vcmask 326912
  %v155 = vsel %vm154, %v153, %v151
  %v156 = vadd.s32 %v138, 4294967256
  %v157 = vperm.slane %v100, %v156
  %vm158 = vcmask 392512
  %v159 = vsel %vm158, %v157, %v155
  %v160 = vadd.s32 %v138, 4294967248
  %v161 = vperm.slane %v102, %v160
  %vm162 = vcmask 458112
  %v163 = vsel %vm162, %v161, %v159
  %v164 = vadd.s32 %v138, 4294967240
  %v165 = vperm.slane %v104, %v164
  %vm166 = vcmask 523712
  %v167 = vsel %vm166, %v165, %v163
  %v168 = vadd.s32 %v138, 4294967232
  %v169 = vperm.slane %v106, %v168
  %vm170 = vcmask 589312
  %v171 = vsel %vm170, %v169, %v167
  %v172 = vadd.s32 %v138, 4294967224
  %v173 = vperm.slane %v108, %v172
  %vm174 = vcmask 654912
  %v175 = vsel %vm174, %v173, %v171
  %v176 = vadd.s32 %v138, 4294967216
  %v177 = vperm.slane %v110, %v176
  %vm178 = vcmask 720512
  %v179 = vsel %vm178, %v177, %v175
  %v180 = vadd.s32 %v138, 4294967208
  %v181 = vperm.slane %v112, %v180
  %vm182 = vcmask 786112
  %v183 = vsel %vm182, %v181, %v179
  %v184 = vadd.s32 %v138, 4294967200
  %v185 = vperm.slane %v114, %v184
  %vm186 = vcmask 851712
  %v187 = vsel %vm186, %v185, %v183
  %v188 = vadd.s32 %v138, 4294967192
  %v189 = vperm.slane %v116, %v188
  %vm190 = vcmask 917312
  %v191 = vsel %vm190, %v189, %v187
  %v192 = vadd.s32 %v138, 4294967184
  %v193 = vperm.slane %v118, %v192
  %vm194 = vcmask 982912
  %v195 = vsel %vm194, %v193, %v191
  %v196 = vadd.s32 %v138, 4294967176
  %v197 = vperm.slane %v120, %v196
  %vm198 = vcmask 1048512
  %v199 = vsel %vm198, %v197, %v195
  %201 = vst [vmem:[%s3] sm:$0x1] %v199
  // Predicated region
  $region13: #{linkgin_forward.5} parent=0 // pred_check
    _
  $region14: #{linkgin_forward.5} parent=0 // pred_check_branch
    %203 = sbr.rel (0) target = $region16
  $region15: #{linkgin_forward.5} parent=0 // pred_region
    _
  $region16: #{linkgin_forward.5} parent=0 // pred_fallthru
    _
  // Predicated region
  $region17: #{linkgin_forward.5} parent=0 // pred_check
    _
  $region18: #{linkgin_forward.5} parent=0 // pred_check_branch
    %205 = sbr.rel (0) target = $region20
  $region19: #{linkgin_forward.5} parent=0 // pred_region
    _
  $region20: #{linkgin_forward.5} parent=0 // pred_fallthru
    _

// kernel: linkgin_forward.3
$region0: #{linkgin_forward.3}
  #allocation0 [shape = 'u32[]', space=smem, size = 0x4, offset = 0x4, fixed_abs, tag = 'smem constant byte address 0x4 - core index']
  #allocation1 [shape = 'u32[72,128]{1,0:T(1,128)}', space=vmem, size = 0x9000, scoped, tag = 'internal scratch']
  #allocation2 [shape = 'f32[128,128]{1,0:T(8,128)}', space=vmem, size = 0x10000, scoped, tag = 'scratch operand']
  #allocation3 [shape = 's32[1]{0}', space=sflag, size = 0x4, scoped, tag = 'scoped memory for linkgin_forward.3']
  #allocation4 [shape = 'u8[512]{0}', space=smem, size = 0x200, scoped, tag = 'prefetched SMEM operand 0']
  #allocation5 [shape = 'u8[512]{0}', space=smem, size = 0x200, scoped, tag = 'prefetched SMEM operand 1']
  %s0 = inlined_call_operand.vmem [shape: s32[2], index: 0, kind: input, shape index: {}]
  %s1 = inlined_call_operand.vmem [shape: s32[2], index: 1, kind: input, shape index: {}]
  %s2 = inlined_call_operand.vmem [shape: bf16[256,256], index: 2, kind: input, shape index: {}]
  %s3 = inlined_call_operand.vmem [shape: bf16[256,128], index: 3, kind: input, shape index: {}]
  %s4 = inlined_call_operand.vmem [shape: bf16[128,128], index: 4, kind: input, shape index: {}]
  %s5 = inlined_call_operand.vmem [shape: f32[1,128], index: 5, kind: input, shape index: {}]
  %s6 = inlined_call_operand.vmem [shape: bf16[128,128], index: 6, kind: input, shape index: {}]
  %s7 = inlined_call_operand.vmem [shape: f32[1,128], index: 7, kind: input, shape index: {}]
  %s8 = inlined_call_operand.vmem [shape: bf16[256,128], index: 8, kind: output, shape index: {}]
  %s9 = sld [smem:[#allocation0]]
  $region69: #{linkgin_forward.3} parent=0
    _
  %s11 = ssub.s32 1, %s9
  %s12 = scalar_select 0, %s11, %s9
  %s14 = sshll.u32 %s0, 4
  %s15 = int_to_ptr.vmem [resolvable:$true] %s14
  %17 = dma.vmem_to_smem %s15, 16, [#allocation4], [#allocation3]
  %s19 = sshll.u32 %s1, 4
  %s20 = int_to_ptr.vmem [resolvable:$true] %s19
  %22 = dma.vmem_to_smem %s20, 16, [#allocation5], [#allocation3]
  %24 = dma.done [#allocation3], 32
  %25 = sfence
  loop: start=0, step=1, limit=4
  $region2: #{linkgin_forward.3} parent=0 // loop_pre_header
    _
  $region3: #{linkgin_forward.3} parent=0 // loop_header
    %s27 = sphi 0, %s31
    %p28 = scmp.ge.s32.totalorder %s27, 4
    %s34 = sphi 0, %s46
    %s35 = sphi 0, %s42
    %s36 = sphi 0, %s34
    %s37 = sphi 0, %s35
    %s38 = sphi 0, %s36
    %s39 = sphi 0, %s37
    %s55 = sphi 0, %s57
    %s58 = sphi 0, %s55
    %s59 = sphi 0, %s58
    %s75 = sphi 0, %s59
    %s79 = sphi 0, %s79
    %s81 = sphi 0, %s79
    %s82 = sphi 0, %s81
    %s96 = sphi 0, %s82
    %s100 = sphi 0, %s100
    %s102 = sphi 0, %s100
    %s103 = sphi 0, %s102
    %s117 = sphi 0, %s103
    %s121 = sphi 0, %s121
    %s123 = sphi 0, %s121
    %s124 = sphi 0, %s123
    %s138 = sphi 0, %s124
    %s142 = sphi 0, %s142
    %s144 = sphi 0, %s142
    %s145 = sphi 0, %s144
    %s159 = sphi 0, %s145
    %s163 = sphi 0, %s163
    %s165 = sphi 0, %s163
    %s166 = sphi 0, %s165
    %s180 = sphi 0, %s166
    %s186 = sphi 0, %s188
    %s189 = sphi 0, %s186
    %s190 = sphi 0, %s189
    %s206 = sphi 0, %s190
  $region4: #{linkgin_forward.3} parent=0 // loop_header_branch
    %30 = sbr.rel (%p28) target = $region8
  $region5: #{linkgin_forward.3} parent=0 // loop_body
    %s32 = ssub.s32 %s27, 1
    %s33 = ssub.s32 %s27, 2
    %s40 = sadd.s32 1, %s35
    %p41 = scmp.ge.s32.totalorder %s40, 1
    %s42 = scalar_select %p41, 0, %s40
    %s43 = sadd.s32 1, %s34
    %s44 = scalar_select %p41, %s43, %s34
    %p45 = scmp.ge.s32.totalorder %s44, 2
    %s46 = scalar_select %p45, 0, %s44
    %s47 = sadd.s32 %s34, %s35
    %s48 = sld [smem:[#allocation4 + %s47]]
    %s49 = sadd.s32 %s46, %s42
    %s50 = sld [smem:[#allocation4 + %s49]]
    %s51 = ssub.s32 %s34, %s46
    %s52 = ssub.s32 %s48, %s50
    %s53 = sor.u32 %s51, %s52
    %p54 = scmp.eq.s32.totalorder %s53, 0
    %s56 = sadd.s32 %s55, 1
    %s57 = scalar_select %p54, %s55, %s56
    %p60 = pneg %p54
    %p61 = scmp.eq.s32.totalorder %s27, 1
    %p62 = por %p60, %p61
    %p63 = scmp.ne.s32.totalorder %s55, %s58
    %p64 = scmp.eq.s32.totalorder %s27, 0
    %p65 = por %p63, %p64
    %p66 = scmp.ne.s32.totalorder %s55, %s58
    %p67 = scmp.eq.s32.totalorder %s32, 1
    %p68 = por %p66, %p67
    %p69 = scmp.ne.s32.totalorder %s58, %s59
    %p70 = scmp.eq.s32.totalorder %s32, 0
    %p71 = por %p69, %p70
    %p72 = scmp.ne.s32.totalorder %s58, %s59
    %p73 = scmp.eq.s32.totalorder %s33, 1
    %p74 = por %p72, %p73
    %p76 = scmp.ne.s32.totalorder %s59, %s75
    %p77 = scmp.eq.s32.totalorder %s33, 0
    %p78 = por %p76, %p77
    %s80 = sadd.s32 %s79, 1
    %p83 = scmp.eq.s32.totalorder %s27, 1
    %p84 = scmp.ne.s32.totalorder %s79, %s81
    %p85 = scmp.eq.s32.totalorder %s27, 0
    %p86 = por %p84, %p85
    %p87 = scmp.ne.s32.totalorder %s79, %s81
    %p88 = scmp.eq.s32.totalorder %s32, 1
    %p89 = por %p87, %p88
    %p90 = scmp.ne.s32.totalorder %s81, %s82
    %p91 = scmp.eq.s32.totalorder %s32, 0
    %p92 = por %p90, %p91
    %p93 = scmp.ne.s32.totalorder %s81, %s82
    %p94 = scmp.eq.s32.totalorder %s33, 1
    %p95 = por %p93, %p94
    %p97 = scmp.ne.s32.totalorder %s82, %s96
    %p98 = scmp.eq.s32.totalorder %s33, 0
    %p99 = por %p97, %p98
    %s101 = sadd.s32 %s100, 1
    %p104 = scmp.eq.s32.totalorder %s27, 1
    %p105 = scmp.ne.s32.totalorder %s100, %s102
    %p106 = scmp.eq.s32.totalorder %s27, 0
    %p107 = por %p105, %p106
    %p108 = scmp.ne.s32.totalorder %s100, %s102
    %p109 = scmp.eq.s32.totalorder %s32, 1
    %p110 = por %p108, %p109
    %p111 = scmp.ne.s32.totalorder %s102, %s103
    %p112 = scmp.eq.s32.totalorder %s32, 0
    %p113 = por %p111, %p112
    %p114 = scmp.ne.s32.totalorder %s102, %s103
    %p115 = scmp.eq.s32.totalorder %s33, 1
    %p116 = por %p114, %p115
    %p118 = scmp.ne.s32.totalorder %s103, %s117
    %p119 = scmp.eq.s32.totalorder %s33, 0
    %p120 = por %p118, %p119
    %s122 = sadd.s32 %s121, 1
    %p125 = scmp.eq.s32.totalorder %s27, 1
    %p126 = scmp.ne.s32.totalorder %s121, %s123
    %p127 = scmp.eq.s32.totalorder %s27, 0
    %p128 = por %p126, %p127
    %p129 = scmp.ne.s32.totalorder %s121, %s123
    %p130 = scmp.eq.s32.totalorder %s32, 1
    %p131 = por %p129, %p130
    %p132 = scmp.ne.s32.totalorder %s123, %s124
    %p133 = scmp.eq.s32.totalorder %s32, 0
    %p134 = por %p132, %p133
    %p135 = scmp.ne.s32.totalorder %s123, %s124
    %p136 = scmp.eq.s32.totalorder %s33, 1
    %p137 = por %p135, %p136
    %p139 = scmp.ne.s32.totalorder %s124, %s138
    %p140 = scmp.eq.s32.totalorder %s33, 0
    %p141 = por %p139, %p140
    %s143 = sadd.s32 %s142, 1
    %p146 = scmp.eq.s32.totalorder %s27, 1
    %p147 = scmp.ne.s32.totalorder %s142, %s144
    %p148 = scmp.eq.s32.totalorder %s27, 0
    %p149 = por %p147, %p148
    %p150 = scmp.ne.s32.totalorder %s142, %s144
    %p151 = scmp.eq.s32.totalorder %s32, 1
    %p152 = por %p150, %p151
    %p153 = scmp.ne.s32.totalorder %s144, %s145
    %p154 = scmp.eq.s32.totalorder %s32, 0
    %p155 = por %p153, %p154
    %p156 = scmp.ne.s32.totalorder %s144, %s145
    %p157 = scmp.eq.s32.totalorder %s33, 1
    %p158 = por %p156, %p157
    %p160 = scmp.ne.s32.totalorder %s145, %s159
    %p161 = scmp.eq.s32.totalorder %s33, 0
    %p162 = por %p160, %p161
    %s164 = sadd.s32 %s163, 1
    %p167 = scmp.eq.s32.totalorder %s27, 1
    %p168 = scmp.ne.s32.totalorder %s163, %s165
    %p169 = scmp.eq.s32.totalorder %s27, 0
    %p170 = por %p168, %p169
    %p171 = scmp.ne.s32.totalorder %s163, %s165
    %p172 = scmp.eq.s32.totalorder %s32, 1
    %p173 = por %p171, %p172
    %p174 = scmp.ne.s32.totalorder %s165, %s166
    %p175 = scmp.eq.s32.totalorder %s32, 0
    %p176 = por %p174, %p175
    %p177 = scmp.ne.s32.totalorder %s165, %s166
    %p178 = scmp.eq.s32.totalorder %s33, 1
    %p179 = por %p177, %p178
    %p181 = scmp.ne.s32.totalorder %s166, %s180
    %p182 = scmp.eq.s32.totalorder %s33, 0
    %p183 = por %p181, %p182
    %s184 = ssub.s32 %s34, %s46
    %p185 = scmp.eq.s32.totalorder %s184, 0
    %s187 = sadd.s32 %s186, 1
    %s188 = scalar_select %p185, %s186, %s187
    %p191 = pneg %p185
    %p192 = scmp.eq.s32.totalorder %s27, 1
    %p193 = por %p191, %p192
    %p194 = scmp.ne.s32.totalorder %s186, %s189
    %p195 = scmp.eq.s32.totalorder %s27, 0
    %p196 = por %p194, %p195
    %p197 = scmp.ne.s32.totalorder %s186, %s189
    %p198 = scmp.eq.s32.totalorder %s32, 1
    %p199 = por %p197, %p198
    %p200 = scmp.ne.s32.totalorder %s189, %s190
    %p201 = scmp.eq.s32.totalorder %s32, 0
    %p202 = por %p200, %p201
    %p203 = scmp.ne.s32.totalorder %s189, %s190
    %p204 = scmp.eq.s32.totalorder %s33, 1
    %p205 = por %p203, %p204
    %p207 = scmp.ne.s32.totalorder %s190, %s206
    %p208 = scmp.eq.s32.totalorder %s33, 0
    %p209 = por %p207, %p208
    %p210 = scmp.le.s32.totalorder 1, %s27
    %p211 = scmp.lt.s32.totalorder %s27, 3
    %p212 = pnand %p210, %p211
    %p213 = pneg %p212
    // Predicated region
    $region9: #{linkgin_forward.3} parent=5 // pred_check
      _
    $region10: #{linkgin_forward.3} parent=5 // pred_check_branch
      %215 = sbr.rel (%p212) target = $region12
    $region11: #{linkgin_forward.3} parent=5 // pred_region
      %s216 = ssub.s32 %s27, 1
      // Predicated region
      $region13: #{linkgin_forward.3} parent=11 // pred_check
        %p217 = pneg %p92
      $region14: #{linkgin_forward.3} parent=11 // pred_check_branch
        %219 = sbr.rel (%p217) target = $region16
      $region15: #{linkgin_forward.3} parent=11 // pred_region
        _
      $region16: #{linkgin_forward.3} parent=11 // pred_fallthru
        _
      // Predicated region
      $region17: #{linkgin_forward.3} parent=11 // pred_check
        %p220 = pneg %p113
      $region18: #{linkgin_forward.3} parent=11 // pred_check_branch
        %222 = sbr.rel (%p220) target = $region20
      $region19: #{linkgin_forward.3} parent=11 // pred_region
        _
      $region20: #{linkgin_forward.3} parent=11 // pred_fallthru
        _
      // Predicated region
      $region21: #{linkgin_forward.3} parent=11 // pred_check
        %p223 = pneg %p134
      $region22: #{linkgin_forward.3} parent=11 // pred_check_branch
        %225 = sbr.rel (%p223) target = $region24
      $region23: #{linkgin_forward.3} parent=11 // pred_region
        _
      $region24: #{linkgin_forward.3} parent=11 // pred_fallthru
        _
      // Predicated region
      $region25: #{linkgin_forward.3} parent=11 // pred_check
        %p226 = pneg %p155
      $region26: #{linkgin_forward.3} parent=11 // pred_check_branch
        %228 = sbr.rel (%p226) target = $region28
      $region27: #{linkgin_forward.3} parent=11 // pred_region
        _
      $region28: #{linkgin_forward.3} parent=11 // pred_fallthru
        _
      // Predicated region
      $region29: #{linkgin_forward.3} parent=11 // pred_check
        %p229 = pneg %p176
      $region30: #{linkgin_forward.3} parent=11 // pred_check_branch
        %231 = sbr.rel (%p229) target = $region32
      $region31: #{linkgin_forward.3} parent=11 // pred_region
        _
      $region32: #{linkgin_forward.3} parent=11 // pred_fallthru
        _
    $region12: #{linkgin_forward.3} parent=5 // pred_fallthru
      _
    %p232 = scmp.lt.s32.totalorder %s27, 2
    // Predicated region
    $region33: #{linkgin_forward.3} parent=5 // pred_check
      %p233 = pneg %p232
    $region34: #{linkgin_forward.3} parent=5 // pred_check_branch
      %235 = sbr.rel (%p233) target = $region36
    $region35: #{linkgin_forward.3} parent=5 // pred_region
      // Predicated region
      $region37: #{linkgin_forward.3} parent=35 // pred_check
        %p236 = pneg %p65
      $region38: #{linkgin_forward.3} parent=35 // pred_check_branch
        %238 = sbr.rel (%p236) target = $region40
      $region39: #{linkgin_forward.3} parent=35 // pred_region
        %s239 = sadd.s32 %s34, %s35
        %s240 = sld [smem:[#allocation4 + %s239]]
        %s241 = smul.u32 16, %s34
        %s242 = smul.u32 2, %s240
        %p243 = scmp.lt.s32.totalorder %s241, 31
        %s244 = scalar_select %p243, %s241, 31
        %p245 = scmp.lt.s32.totalorder %s242, 1
        %s246 = scalar_select %p245, %s242, 1
        %s247 = smul.addr %s244, 2
        %s248 = sadd.s32 %s246, %s247
        %s249 = smul.addr %s248, 4
        %s250 = scalar_lea.vmem %s2, %s249
        %s251 = sadd.s32 %s34, %s35
        %s252 = sld [smem:[#allocation4 + %s251]]
        %s253 = smul.u32 16, %s34
        %s254 = smul.u32 2, %s252
      $region40: #{linkgin_forward.3} parent=35 // pred_fallthru
        _
    $region36: #{linkgin_forward.3} parent=5 // pred_fallthru
      _
    %p255 = scmp.le.s32.totalorder 1, %s27
    %p256 = scmp.lt.s32.totalorder %s27, 3
    %p257 = pnand %p255, %p256
    %p258 = pneg %p257
    // Predicated region
    $region41: #{linkgin_forward.3} parent=5 // pred_check
      _
    $region42: #{linkgin_forward.3} parent=5 // pred_check_branch
      %260 = sbr.rel (%p257) target = $region44
    $region43: #{linkgin_forward.3} parent=5 // pred_region
      %s261 = ssub.s32 %s27, 1
      %s262 = sadd.s32 %s36, %s37
      %s263 = sld [smem:[#allocation4 + %s262]]
      %s264 = smul.u32 16, %s36
      %s265 = smul.u32 2, %s263
      %p266 = scmp.lt.s32.totalorder %s264, 31
      %s267 = scalar_select %p266, %s264, 31
      %p268 = scmp.lt.s32.totalorder %s265, 1
      %s269 = scalar_select %p268, %s265, 1
      %s270 = smul.addr %s267, 2
      %s271 = sadd.s32 %s269, %s270
      %s272 = smul.addr %s271, 4
      %s273 = scalar_lea.vmem %s2, %s272
      %p274 = pneg %p71
      %p275 = pneg %p68
      %p276 = pneg %p92
      %p277 = pneg %p89
      %p278 = pneg %p113
      %p279 = pneg %p110
      %p280 = pneg %p134
      %p281 = pneg %p131
      %p282 = pneg %p155
      %p283 = pneg %p152
      %p284 = pneg %p176
      %p285 = pneg %p173
      %p286 = pneg %p202
      %p287 = pneg %p199
      %s288 = smul.u32 16, %s36
      %p289 = scmp.lt.s32.totalorder %s288, 31
      %s290 = scalar_select %p289, %s288, 31
      %s291 = smul.addr %s290, 4
      %s292 = scalar_lea.vmem %s8, %s291
      %s293 = sadd.s32 %s36, %s37
      %s294 = sld [smem:[#allocation4 + %s293]]
      %s295 = smul.u32 16, %s36
      %s296 = smul.u32 2, %s294
      %p297 = scmp.lt.s32.totalorder %s295, 31
      %s298 = scalar_select %p297, %s295, 31
      %p299 = scmp.lt.s32.totalorder %s296, 1
      %s300 = scalar_select %p299, %s296, 1
      %s301 = smul.addr %s298, 2
      %s302 = sadd.s32 %s300, %s301
      %s303 = smul.addr %s302, 4
      %s304 = scalar_lea.vmem %s2, %s303
      %s305 = sadd.s32 %s36, %s37
      %s306 = sld [smem:[#allocation4 + %s305]]
      %s307 = smul.u32 16, %s36
      %s308 = smul.u32 2, %s306
      %s309 = smul.u32 16, %s36
      %p310 = scmp.lt.s32.totalorder %s309, 31
      %s311 = scalar_select %p310, %s309, 31
      %s312 = smul.addr %s311, 4
      %s313 = scalar_lea.vmem %s8, %s312
      %s314 = smul.u32 16, %s36
      %p315 = scmp.eq.s32.totalorder %s37, 0
      // Predicated region
      $region45: #{linkgin_forward.3} parent=43 // pred_check
        %p316 = pneg %p315
      $region46: #{linkgin_forward.3} parent=43 // pred_check_branch
        %318 = sbr.rel (%p316) target = $region48
      $region47: #{linkgin_forward.3} parent=43 // pred_region
        %319 = vst [vmem:[#allocation2] sm:$0xff] 0.0
        %320 = vst [vmem:[#allocation2 + $0x8] sm:$0xff] 0.0
        %321 = vst [vmem:[#allocation2 + $0x10] sm:$0xff] 0.0
        %322 = vst [vmem:[#allocation2 + $0x18] sm:$0xff] 0.0
        %323 = vst [vmem:[#allocation2 + $0x20] sm:$0xff] 0.0
        %324 = vst [vmem:[#allocation2 + $0x28] sm:$0xff] 0.0
        %325 = vst [vmem:[#allocation2 + $0x30] sm:$0xff] 0.0
        %326 = vst [vmem:[#allocation2 + $0x38] sm:$0xff] 0.0
        %327 = vst [vmem:[#allocation2 + $0x40] sm:$0xff] 0.0
        %328 = vst [vmem:[#allocation2 + $0x48] sm:$0xff] 0.0
        %329 = vst [vmem:[#allocation2 + $0x50] sm:$0xff] 0.0
        %330 = vst [vmem:[#allocation2 + $0x58] sm:$0xff] 0.0
        %331 = vst [vmem:[#allocation2 + $0x60] sm:$0xff] 0.0
        %332 = vst [vmem:[#allocation2 + $0x68] sm:$0xff] 0.0
        %333 = vst [vmem:[#allocation2 + $0x70] sm:$0xff] 0.0
        %334 = vst [vmem:[#allocation2 + $0x78] sm:$0xff] 0.0
      $region48: #{linkgin_forward.3} parent=43 // pred_fallthru
        _
      %s335 = sld [smem:[#allocation5 + %s36]]
      %p336 = scmp.lt.s32.totalorder %s37, %s335
      // Predicated region
      $region49: #{linkgin_forward.3} parent=43 // pred_check
        %p337 = pneg %p336
      $region50: #{linkgin_forward.3} parent=43 // pred_check_branch
        %339 = sbr.rel (%p337) target = $region52
      $region51: #{linkgin_forward.3} parent=43 // pred_region
        %s340 = sadd.s32 %s36, %s37
        %s341 = sld [smem:[#allocation4 + %s340]]
        %s342 = smul.u32 %s341, 256
        %s343 = sshra.s32 %s342, 3
        %s344 = sand.u32 %s342, 7
        %s345 = smul.addr %s343, 4
        %s346 = scalar_lea.vmem %s3, %s345
        %v347 = vld [vmem:[%s346] sm:$0xf]
        %v348 = vld [vmem:[%s346 + $0x4] sm:$0xf]
        %v349 = vld [vmem:[%s346 + $0x8] sm:$0xf]
        %v350 = vld [vmem:[%s346 + $0xc] sm:$0xf]
        %v351 = vld [vmem:[%s346 + $0x10] sm:$0xf]
        %v352 = vld [vmem:[%s346 + $0x14] sm:$0xf]
        %v353 = vld [vmem:[%s346 + $0x18] sm:$0xf]
        %v354 = vld [vmem:[%s346 + $0x1c] sm:$0xf]
        %v355 = vld [vmem:[%s346 + $0x20] sm:$0xf]
        %v356 = vld [vmem:[%s346 + $0x24] sm:$0xf]
        %v357 = vld [vmem:[%s346 + $0x28] sm:$0xf]
        %v358 = vld [vmem:[%s346 + $0x2c] sm:$0xf]
        %v359 = vld [vmem:[%s346 + $0x30] sm:$0xf]
        %v360 = vld [vmem:[%s346 + $0x34] sm:$0xf]
        %v361 = vld [vmem:[%s346 + $0x38] sm:$0xf]
        %v362 = vld [vmem:[%s346 + $0x3c] sm:$0xf]
        %v363 = vld [vmem:[%s346 + $0x40] sm:$0xf]
        %v364 = vld [vmem:[%s346 + $0x44] sm:$0xf]
        %v365 = vld [vmem:[%s346 + $0x48] sm:$0xf]
        %v366 = vld [vmem:[%s346 + $0x4c] sm:$0xf]
        %v367 = vld [vmem:[%s346 + $0x50] sm:$0xf]
        %v368 = vld [vmem:[%s346 + $0x54] sm:$0xf]
        %v369 = vld [vmem:[%s346 + $0x58] sm:$0xf]
        %v370 = vld [vmem:[%s346 + $0x5c] sm:$0xf]
        %v371 = vld [vmem:[%s346 + $0x60] sm:$0xf]
        %v372 = vld [vmem:[%s346 + $0x64] sm:$0xf]
        %v373 = vld [vmem:[%s346 + $0x68] sm:$0xf]
        %v374 = vld [vmem:[%s346 + $0x6c] sm:$0xf]
        %v375 = vld [vmem:[%s346 + $0x70] sm:$0xf]
        %v376 = vld [vmem:[%s346 + $0x74] sm:$0xf]
        %v377 = vld [vmem:[%s346 + $0x78] sm:$0xf]
        %v378 = vld [vmem:[%s346 + $0x7c] sm:$0xf]
        %v379 = vld [vmem:[#allocation2] sm:$0xff]
        %v380 = vld [vmem:[#allocation2 + $0x8] sm:$0xff]
        %v381 = vld [vmem:[#allocation2 + $0x10] sm:$0xff]
        %v382 = vld [vmem:[#allocation2 + $0x18] sm:$0xff]
        %v383 = vld [vmem:[#allocation2 + $0x20] sm:$0xff]
        %v384 = vld [vmem:[#allocation2 + $0x28] sm:$0xff]
        %v385 = vld [vmem:[#allocation2 + $0x30] sm:$0xff]
        %v386 = vld [vmem:[#allocation2 + $0x38] sm:$0xff]
        %v387 = vld [vmem:[#allocation2 + $0x40] sm:$0xff]
        %v388 = vld [vmem:[#allocation2 + $0x48] sm:$0xff]
        %v389 = vld [vmem:[#allocation2 + $0x50] sm:$0xff]
        %v390 = vld [vmem:[#allocation2 + $0x58] sm:$0xff]
        %v391 = vld [vmem:[#allocation2 + $0x60] sm:$0xff]
        %v392 = vld [vmem:[#allocation2 + $0x68] sm:$0xff]
        %v393 = vld [vmem:[#allocation2 + $0x70] sm:$0xff]
        %v394 = vld [vmem:[#allocation2 + $0x78] sm:$0xff]
        %v395 = vld [vmem:[%s304] sm:$0xff]
        %v396 = vld [vmem:[%s304 + $0x8] sm:$0xff]
        %v397 = vld [vmem:[%s304 + $0x10] sm:$0xff]
        %v398 = vld [vmem:[%s304 + $0x18] sm:$0xff]
        %v399 = vld [vmem:[%s304 + $0x20] sm:$0xff]
        %v400 = vld [vmem:[%s304 + $0x28] sm:$0xff]
        %v401 = vld [vmem:[%s304 + $0x30] sm:$0xff]
        %v402 = vld [vmem:[%s304 + $0x38] sm:$0xff]
        %v403 = vld [vmem:[%s304 + $0x40] sm:$0xff]
        %v404 = vld [vmem:[%s304 + $0x48] sm:$0xff]
        %v405 = vld [vmem:[%s304 + $0x50] sm:$0xff]
        %v406 = vld [vmem:[%s304 + $0x58] sm:$0xff]
        %v407 = vld [vmem:[%s304 + $0x60] sm:$0xff]
        %v408 = vld [vmem:[%s304 + $0x68] sm:$0xff]
        %v409 = vld [vmem:[%s304 + $0x70] sm:$0xff]
        %v410 = vld [vmem:[%s304 + $0x78] sm:$0xff]
        %v427 = vunpack.c.l.b16 %v395
        %v428 = vunpack.c.h.b16 %v395
        %v429 = vunpack.c.l.b16 %v396
        %v430 = vunpack.c.h.b16 %v396
        %v431 = vunpack.c.l.b16 %v397
        %v432 = vunpack.c.h.b16 %v397
        %v433 = vunpack.c.l.b16 %v398
        %v434 = vunpack.c.h.b16 %v398
        %v435 = vunpack.c.l.b16 %v399
        %v436 = vunpack.c.h.b16 %v399
        %v437 = vunpack.c.l.b16 %v400
        %v438 = vunpack.c.h.b16 %v400
        %v439 = vunpack.c.l.b16 %v401
        %v440 = vunpack.c.h.b16 %v401
        %v441 = vunpack.c.l.b16 %v402
        %v442 = vunpack.c.h.b16 %v402
        %v443 = vunpack.c.l.b16 %v403
        %v444 = vunpack.c.h.b16 %v403
        %v445 = vunpack.c.l.b16 %v404
        %v446 = vunpack.c.h.b16 %v404
        %v447 = vunpack.c.l.b16 %v405
        %v448 = vunpack.c.h.b16 %v405
        %v449 = vunpack.c.l.b16 %v406
        %v450 = vunpack.c.h.b16 %v406
        %v451 = vunpack.c.l.b16 %v407
        %v452 = vunpack.c.h.b16 %v407
        %v453 = vunpack.c.l.b16 %v408
        %v454 = vunpack.c.h.b16 %v408
        %v455 = vunpack.c.l.b16 %v409
        %v456 = vunpack.c.h.b16 %v409
        %v457 = vunpack.c.l.b16 %v410
        %v458 = vunpack.c.h.b16 %v410
        %v459 = vpack.c.b16 %v429, %v427
        %v460 = vpack.c.b16 %v430, %v428
        %v461 = vpack.c.b16 %v433, %v431
        %v462 = vpack.c.b16 %v434, %v432
        %v463 = vpack.c.b16 %v437, %v435
        %v464 = vpack.c.b16 %v438, %v436
        %v465 = vpack.c.b16 %v441, %v439
        %v466 = vpack.c.b16 %v442, %v440
        %v467 = vpack.c.b16 %v445, %v443
        %v468 = vpack.c.b16 %v446, %v444
        %v469 = vpack.c.b16 %v449, %v447
        %v470 = vpack.c.b16 %v450, %v448
        %v471 = vpack.c.b16 %v453, %v451
        %v472 = vpack.c.b16 %v454, %v452
        %v473 = vpack.c.b16 %v457, %v455
        %v474 = vpack.c.b16 %v458, %v456
        %v523 = vunpack.c.l.b16 %v347
        %v524 = vunpack.c.l.b16 %v348
        %v525 = vunpack.c.l.b16 %v349
        %v526 = vunpack.c.l.b16 %v350
        %v527 = vunpack.c.l.b16 %v351
        %v528 = vunpack.c.l.b16 %v352
        %v529 = vunpack.c.l.b16 %v353
        %v530 = vunpack.c.l.b16 %v354
        %v531 = vunpack.c.l.b16 %v355
        %v532 = vunpack.c.l.b16 %v356
        %v533 = vunpack.c.l.b16 %v357
        %v534 = vunpack.c.l.b16 %v358
        %v535 = vunpack.c.l.b16 %v359
        %v536 = vunpack.c.l.b16 %v360
        %v537 = vunpack.c.l.b16 %v361
        %v538 = vunpack.c.l.b16 %v362
        %v539 = vunpack.c.l.b16 %v363
        %v540 = vunpack.c.l.b16 %v364
        %v541 = vunpack.c.l.b16 %v365
        %v542 = vunpack.c.l.b16 %v366
        %v543 = vunpack.c.l.b16 %v367
        %v544 = vunpack.c.l.b16 %v368
        %v545 = vunpack.c.l.b16 %v369
        %v546 = vunpack.c.l.b16 %v370
        %v547 = vunpack.c.l.b16 %v371
        %v548 = vunpack.c.l.b16 %v372
        %v549 = vunpack.c.l.b16 %v373
        %v550 = vunpack.c.l.b16 %v374
        %v551 = vunpack.c.l.b16 %v375
        %v552 = vunpack.c.l.b16 %v376
        %v553 = vunpack.c.l.b16 %v377
        %v554 = vunpack.c.l.b16 %v378
        %v555 = vpack.c.b16 %v524, %v523
        %v556 = vpack.c.b16 %v526, %v525
        %v557 = vpack.c.b16 %v528, %v527
        %v558 = vpack.c.b16 %v530, %v529
        %v559 = vpack.c.b16 %v532, %v531
        %v560 = vpack.c.b16 %v534, %v533
        %v561 = vpack.c.b16 %v536, %v535
        %v562 = vpack.c.b16 %v538, %v537
        %v563 = vpack.c.b16 %v540, %v539
        %v564 = vpack.c.b16 %v542, %v541
        %v565 = vpack.c.b16 %v544, %v543
        %v566 = vpack.c.b16 %v546, %v545
        %v567 = vpack.c.b16 %v548, %v547
        %v568 = vpack.c.b16 %v550, %v549
        %v569 = vpack.c.b16 %v552, %v551
        %v570 = vpack.c.b16 %v554, %v553
        %587 = vmatpush.bf16.msra.mxu0 %v562
        %588 = vmatpush.bf16.msra.mxu0 %v561
        %589 = vmatpush.bf16.msra.mxu0 %v560
        %590 = vmatpush.bf16.msra.mxu0 %v559
        %591 = vmatpush.bf16.msra.mxu0 %v558
        %592 = vmatpush.bf16.msra.mxu0 %v557
        %593 = vmatpush.bf16.msra.mxu0 %v556
        %594 = vmatpush.bf16.msra.mxu0 %v555
        %595 = vmatmul.bf16.gmra.mxu0 %v459
        %v596 = vpop.f32.mrf.mxu0
        %v597 = vadd.f32 0.0, %v596
        %v598 = vpop.f32.mrf.mxu0
        %v599 = vadd.f32 0.0, %v598
        %600 = vmatmul.bf16.gmra.mxu0 %v461
        %v601 = vpop.f32.mrf.mxu0
        %v602 = vadd.f32 0.0, %v601
        %v603 = vpop.f32.mrf.mxu0
        %v604 = vadd.f32 0.0, %v603
        %605 = vmatmul.bf16.gmra.mxu0 %v463
        %v606 = vpop.f32.mrf.mxu0
        %v607 = vadd.f32 0.0, %v606
        %v608 = vpop.f32.mrf.mxu0
        %v609 = vadd.f32 0.0, %v608
        %610 = vmatmul.bf16.gmra.mxu0 %v465
        %v611 = vpop.f32.mrf.mxu0
        %v612 = vadd.f32 0.0, %v611
        %v613 = vpop.f32.mrf.mxu0
        %v614 = vadd.f32 0.0, %v613
        %615 = vmatmul.bf16.gmra.mxu0 %v467
        %v616 = vpop.f32.mrf.mxu0
        %v617 = vadd.f32 0.0, %v616
        %v618 = vpop.f32.mrf.mxu0
        %v619 = vadd.f32 0.0, %v618
        %620 = vmatmul.bf16.gmra.mxu0 %v469
        %v621 = vpop.f32.mrf.mxu0
        %v622 = vadd.f32 0.0, %v621
        %v623 = vpop.f32.mrf.mxu0
        %v624 = vadd.f32 0.0, %v623
        %625 = vmatmul.bf16.gmra.mxu0 %v471
        %v626 = vpop.f32.mrf.mxu0
        %v627 = vadd.f32 0.0, %v626
        %v628 = vpop.f32.mrf.mxu0
        %v629 = vadd.f32 0.0, %v628
        %630 = vmatmul.bf16.gmra.mxu0 %v473
        %v631 = vpop.f32.mrf.mxu0
        %v632 = vadd.f32 0.0, %v631
        %v633 = vpop.f32.mrf.mxu0
        %v634 = vadd.f32 0.0, %v633
        %635 = vdwg.mxu0
        %636 = vmatpush.bf16.msra.mxu0 %v570
        %637 = vmatpush.bf16.msra.mxu0 %v569
        %638 = vmatpush.bf16.msra.mxu0 %v568
        %639 = vmatpush.bf16.msra.mxu0 %v567
        %640 = vmatpush.bf16.msra.mxu0 %v566
        %641 = vmatpush.bf16.msra.mxu0 %v565
        %642 = vmatpush.bf16.msra.mxu0 %v564
        %643 = vmatpush.bf16.msra.mxu0 %v563
        %644 = vmatmul.bf16.gmra.mxu0 %v460
        %v645 = vpop.f32.mrf.mxu0
        %v646 = vadd.f32 %v597, %v645
        %v647 = vpop.f32.mrf.mxu0
        %v648 = vadd.f32 %v599, %v647
        %649 = vmatmul.bf16.gmra.mxu0 %v462
        %v650 = vpop.f32.mrf.mxu0
        %v651 = vadd.f32 %v602, %v650
        %v652 = vpop.f32.mrf.mxu0
        %v653 = vadd.f32 %v604, %v652
        %654 = vmatmul.bf16.gmra.mxu0 %v464
        %v655 = vpop.f32.mrf.mxu0
        %v656 = vadd.f32 %v607, %v655
        %v657 = vpop.f32.mrf.mxu0
        %v658 = vadd.f32 %v609, %v657
        %659 = vmatmul.bf16.gmra.mxu0 %v466
        %v660 = vpop.f32.mrf.mxu0
        %v661 = vadd.f32 %v612, %v660
        %v662 = vpop.f32.mrf.mxu0
        %v663 = vadd.f32 %v614, %v662
        %664 = vmatmul.bf16.gmra.mxu0 %v468
        %v665 = vpop.f32.mrf.mxu0
        %v666 = vadd.f32 %v617, %v665
        %v667 = vpop.f32.mrf.mxu0
        %v668 = vadd.f32 %v619, %v667
        %669 = vmatmul.bf16.gmra.mxu0 %v470
        %v670 = vpop.f32.mrf.mxu0
        %v671 = vadd.f32 %v622, %v670
        %v672 = vpop.f32.mrf.mxu0
        %v673 = vadd.f32 %v624, %v672
        %674 = vmatmul.bf16.gmra.mxu0 %v472
        %v675 = vpop.f32.mrf.mxu0
        %v676 = vadd.f32 %v627, %v675
        %v677 = vpop.f32.mrf.mxu0
        %v678 = vadd.f32 %v629, %v677
        %679 = vmatmul.bf16.gmra.mxu0 %v474
        %v680 = vpop.f32.mrf.mxu0
        %v681 = vadd.f32 %v632, %v680
        %v682 = vpop.f32.mrf.mxu0
        %v683 = vadd.f32 %v634, %v682
        %684 = vdwg.mxu0
        %v685 = vadd.f32 %v379, %v646
        %v686 = vadd.f32 %v380, %v648
        %v687 = vadd.f32 %v381, %v651
        %v688 = vadd.f32 %v382, %v653
        %v689 = vadd.f32 %v383, %v656
        %v690 = vadd.f32 %v384, %v658
        %v691 = vadd.f32 %v385, %v661
        %v692 = vadd.f32 %v386, %v663
        %v693 = vadd.f32 %v387, %v666
        %v694 = vadd.f32 %v388, %v668
        %v695 = vadd.f32 %v389, %v671
        %v696 = vadd.f32 %v390, %v673
        %v697 = vadd.f32 %v391, %v676
        %v698 = vadd.f32 %v392, %v678
        %v699 = vadd.f32 %v393, %v681
        %v700 = vadd.f32 %v394, %v683
        %701 = vst [vmem:[#allocation2] sm:$0xff] %v685
        %702 = vst [vmem:[#allocation2 + $0x8] sm:$0xff] %v686
        %703 = vst [vmem:[#allocation2 + $0x10] sm:$0xff] %v687
        %704 = vst [vmem:[#allocation2 + $0x18] sm:$0xff] %v688
        %705 = vst [vmem:[#allocation2 + $0x20] sm:$0xff] %v689
        %706 = vst [vmem:[#allocation2 + $0x28] sm:$0xff] %v690
        %707 = vst [vmem:[#allocation2 + $0x30] sm:$0xff] %v691
        %708 = vst [vmem:[#allocation2 + $0x38] sm:$0xff] %v692
        %709 = vst [vmem:[#allocation2 + $0x40] sm:$0xff] %v693
        %710 = vst [vmem:[#allocation2 + $0x48] sm:$0xff] %v694
        %711 = vst [vmem:[#allocation2 + $0x50] sm:$0xff] %v695
        %712 = vst [vmem:[#allocation2 + $0x58] sm:$0xff] %v696
        %713 = vst [vmem:[#allocation2 + $0x60] sm:$0xff] %v697
        %714 = vst [vmem:[#allocation2 + $0x68] sm:$0xff] %v698
        %715 = vst [vmem:[#allocation2 + $0x70] sm:$0xff] %v699
        %716 = vst [vmem:[#allocation2 + $0x78] sm:$0xff] %v700
      $region52: #{linkgin_forward.3} parent=43 // pred_fallthru
        _
      // Predicated region
      $region53: #{linkgin_forward.3} parent=43 // pred_check
        %p717 = pneg %p315
      $region54: #{linkgin_forward.3} parent=43 // pred_check_branch
        %719 = sbr.rel (%p717) target = $region56
      $region55: #{linkgin_forward.3} parent=43 // pred_region
        %v720 = vld [vmem:[#allocation2] sm:$0xff]
        %v721 = vld [vmem:[#allocation2 + $0x8] sm:$0xff]
        %v722 = vld [vmem:[#allocation2 + $0x10] sm:$0xff]
        %v723 = vld [vmem:[#allocation2 + $0x18] sm:$0xff]
        %v724 = vld [vmem:[#allocation2 + $0x20] sm:$0xff]
        %v725 = vld [vmem:[#allocation2 + $0x28] sm:$0xff]
        %v726 = vld [vmem:[#allocation2 + $0x30] sm:$0xff]
        %v727 = vld [vmem:[#allocation2 + $0x38] sm:$0xff]
        %v728 = vld [vmem:[#allocation2 + $0x40] sm:$0xff]
        %v729 = vld [vmem:[#allocation2 + $0x48] sm:$0xff]
        %v730 = vld [vmem:[#allocation2 + $0x50] sm:$0xff]
        %v731 = vld [vmem:[#allocation2 + $0x58] sm:$0xff]
        %v732 = vld [vmem:[#allocation2 + $0x60] sm:$0xff]
        %v733 = vld [vmem:[#allocation2 + $0x68] sm:$0xff]
        %v734 = vld [vmem:[#allocation2 + $0x70] sm:$0xff]
        %v735 = vld [vmem:[#allocation2 + $0x78] sm:$0xff]
        %v736 = vpack.c.bf16 %v721, %v720
        %v737 = vpack.c.bf16 %v723, %v722
        %v738 = vpack.c.bf16 %v725, %v724
        %v739 = vpack.c.bf16 %v727, %v726
        %v740 = vpack.c.bf16 %v729, %v728
        %v741 = vpack.c.bf16 %v731, %v730
        %v742 = vpack.c.bf16 %v733, %v732
        %v743 = vpack.c.bf16 %v735, %v734
        %v744 = vld [vmem:[%s4] sm:$0xf]
        %v745 = vld [vmem:[%s4 + $0x4] sm:$0xf]
        %v746 = vld [vmem:[%s4 + $0x8] sm:$0xf]
        %v747 = vld [vmem:[%s4 + $0xc] sm:$0xf]
        %v748 = vld [vmem:[%s4 + $0x10] sm:$0xf]
        %v749 = vld [vmem:[%s4 + $0x14] sm:$0xf]
        %v750 = vld [vmem:[%s4 + $0x18] sm:$0xf]
        %v751 = vld [vmem:[%s4 + $0x1c] sm:$0xf]
        %v752 = vld [vmem:[%s4 + $0x20] sm:$0xf]
        %v753 = vld [vmem:[%s4 + $0x24] sm:$0xf]
        %v754 = vld [vmem:[%s4 + $0x28] sm:$0xf]
        %v755 = vld [vmem:[%s4 + $0x2c] sm:$0xf]
        %v756 = vld [vmem:[%s4 + $0x30] sm:$0xf]
        %v757 = vld [vmem:[%s4 + $0x34] sm:$0xf]
        %v758 = vld [vmem:[%s4 + $0x38] sm:$0xf]
        %v759 = vld [vmem:[%s4 + $0x3c] sm:$0xf]
        %v760 = vld [vmem:[%s5] sm:$0x1]
        %v762 = vperm.slane %v760, 0
        %v780 = vunpack.c.l.b16 %v744
        %v781 = vunpack.c.l.b16 %v745
        %v782 = vunpack.c.l.b16 %v746
        %v783 = vunpack.c.l.b16 %v747
        %v784 = vunpack.c.l.b16 %v748
        %v785 = vunpack.c.l.b16 %v749
        %v786 = vunpack.c.l.b16 %v750
        %v787 = vunpack.c.l.b16 %v751
        %v788 = vunpack.c.l.b16 %v752
        %v789 = vunpack.c.l.b16 %v753
        %v790 = vunpack.c.l.b16 %v754
        %v791 = vunpack.c.l.b16 %v755
        %v792 = vunpack.c.l.b16 %v756
        %v793 = vunpack.c.l.b16 %v757
        %v794 = vunpack.c.l.b16 %v758
        %v795 = vunpack.c.l.b16 %v759
        %v796 = vpack.c.b16 %v781, %v780
        %v797 = vpack.c.b16 %v783, %v782
        %v798 = vpack.c.b16 %v785, %v784
        %v799 = vpack.c.b16 %v787, %v786
        %v800 = vpack.c.b16 %v789, %v788
        %v801 = vpack.c.b16 %v791, %v790
        %v802 = vpack.c.b16 %v793, %v792
        %v803 = vpack.c.b16 %v795, %v794
        %812 = vmatpush.bf16.msra.mxu0 %v803
        %813 = vmatpush.bf16.msra.mxu0 %v802
        %814 = vmatpush.bf16.msra.mxu0 %v801
        %815 = vmatpush.bf16.msra.mxu0 %v800
        %816 = vmatpush.bf16.msra.mxu0 %v799
        %817 = vmatpush.bf16.msra.mxu0 %v798
        %818 = vmatpush.bf16.msra.mxu0 %v797
        %819 = vmatpush.bf16.msra.mxu0 %v796
        %820 = vmatmul.bf16.gmra.mxu0 %v736
        %v821 = vpop.f32.mrf.mxu0
        %v822 = vadd.f32 %v762, %v821
        %v823 = vpop.f32.mrf.mxu0
        %v824 = vadd.f32 %v762, %v823
        %825 = vmatmul.bf16.gmra.mxu0 %v737
        %v826 = vpop.f32.mrf.mxu0
        %v827 = vadd.f32 %v762, %v826
        %v828 = vpop.f32.mrf.mxu0
        %v829 = vadd.f32 %v762, %v828
        %830 = vmatmul.bf16.gmra.mxu0 %v738
        %v831 = vpop.f32.mrf.mxu0
        %v832 = vadd.f32 %v762, %v831
        %v833 = vpop.f32.mrf.mxu0
        %v834 = vadd.f32 %v762, %v833
        %835 = vmatmul.bf16.gmra.mxu0 %v739
        %v836 = vpop.f32.mrf.mxu0
        %v837 = vadd.f32 %v762, %v836
        %v838 = vpop.f32.mrf.mxu0
        %v839 = vadd.f32 %v762, %v838
        %840 = vmatmul.bf16.gmra.mxu0 %v740
        %v841 = vpop.f32.mrf.mxu0
        %v842 = vadd.f32 %v762, %v841
        %v843 = vpop.f32.mrf.mxu0
        %v844 = vadd.f32 %v762, %v843
        %845 = vmatmul.bf16.gmra.mxu0 %v741
        %v846 = vpop.f32.mrf.mxu0
        %v847 = vadd.f32 %v762, %v846
        %v848 = vpop.f32.mrf.mxu0
        %v849 = vadd.f32 %v762, %v848
        %850 = vmatmul.bf16.gmra.mxu0 %v742
        %v851 = vpop.f32.mrf.mxu0
        %v852 = vadd.f32 %v762, %v851
        %v853 = vpop.f32.mrf.mxu0
        %v854 = vadd.f32 %v762, %v853
        %855 = vmatmul.bf16.gmra.mxu0 %v743
        %v856 = vpop.f32.mrf.mxu0
        %v857 = vadd.f32 %v762, %v856
        %v858 = vpop.f32.mrf.mxu0
        %v859 = vadd.f32 %v762, %v858
        %860 = vdwg.mxu0
        %v861 = vmax.f32 %v822, 0.0
        %v862 = vmax.f32 %v824, 0.0
        %v863 = vmax.f32 %v827, 0.0
        %v864 = vmax.f32 %v829, 0.0
        %v865 = vmax.f32 %v832, 0.0
        %v866 = vmax.f32 %v834, 0.0
        %v867 = vmax.f32 %v837, 0.0
        %v868 = vmax.f32 %v839, 0.0
        %v869 = vmax.f32 %v842, 0.0
        %v870 = vmax.f32 %v844, 0.0
        %v871 = vmax.f32 %v847, 0.0
        %v872 = vmax.f32 %v849, 0.0
        %v873 = vmax.f32 %v852, 0.0
        %v874 = vmax.f32 %v854, 0.0
        %v875 = vmax.f32 %v857, 0.0
        %v876 = vmax.f32 %v859, 0.0
        %v877 = vpack.c.bf16 %v862, %v861
        %v878 = vpack.c.bf16 %v864, %v863
        %v879 = vpack.c.bf16 %v866, %v865
        %v880 = vpack.c.bf16 %v868, %v867
        %v881 = vpack.c.bf16 %v870, %v869
        %v882 = vpack.c.bf16 %v872, %v871
        %v883 = vpack.c.bf16 %v874, %v873
        %v884 = vpack.c.bf16 %v876, %v875
        %v885 = vld [vmem:[%s6] sm:$0xf]
        %v886 = vld [vmem:[%s6 + $0x4] sm:$0xf]
        %v887 = vld [vmem:[%s6 + $0x8] sm:$0xf]
        %v888 = vld [vmem:[%s6 + $0xc] sm:$0xf]
        %v889 = vld [vmem:[%s6 + $0x10] sm:$0xf]
        %v890 = vld [vmem:[%s6 + $0x14] sm:$0xf]
        %v891 = vld [vmem:[%s6 + $0x18] sm:$0xf]
        %v892 = vld [vmem:[%s6 + $0x1c] sm:$0xf]
        %v893 = vld [vmem:[%s6 + $0x20] sm:$0xf]
        %v894 = vld [vmem:[%s6 + $0x24] sm:$0xf]
        %v895 = vld [vmem:[%s6 + $0x28] sm:$0xf]
        %v896 = vld [vmem:[%s6 + $0x2c] sm:$0xf]
        %v897 = vld [vmem:[%s6 + $0x30] sm:$0xf]
        %v898 = vld [vmem:[%s6 + $0x34] sm:$0xf]
        %v899 = vld [vmem:[%s6 + $0x38] sm:$0xf]
        %v900 = vld [vmem:[%s6 + $0x3c] sm:$0xf]
        %v901 = vld [vmem:[%s7] sm:$0x1]
        %v903 = vperm.slane %v901, 0
        %v921 = vunpack.c.l.b16 %v885
        %v922 = vunpack.c.l.b16 %v886
        %v923 = vunpack.c.l.b16 %v887
        %v924 = vunpack.c.l.b16 %v888
        %v925 = vunpack.c.l.b16 %v889
        %v926 = vunpack.c.l.b16 %v890
        %v927 = vunpack.c.l.b16 %v891
        %v928 = vunpack.c.l.b16 %v892
        %v929 = vunpack.c.l.b16 %v893
        %v930 = vunpack.c.l.b16 %v894
        %v931 = vunpack.c.l.b16 %v895
        %v932 = vunpack.c.l.b16 %v896
        %v933 = vunpack.c.l.b16 %v897
        %v934 = vunpack.c.l.b16 %v898
        %v935 = vunpack.c.l.b16 %v899
        %v936 = vunpack.c.l.b16 %v900
        %v937 = vpack.c.b16 %v922, %v921
        %v938 = vpack.c.b16 %v924, %v923
        %v939 = vpack.c.b16 %v926, %v925
        %v940 = vpack.c.b16 %v928, %v927
        %v941 = vpack.c.b16 %v930, %v929
        %v942 = vpack.c.b16 %v932, %v931
        %v943 = vpack.c.b16 %v934, %v933
        %v944 = vpack.c.b16 %v936, %v935
        %953 = vmatpush.bf16.msra.mxu0 %v944
        %954 = vmatpush.bf16.msra.mxu0 %v943
        %955 = vmatpush.bf16.msra.mxu0 %v942
        %956 = vmatpush.bf16.msra.mxu0 %v941
        %957 = vmatpush.bf16.msra.mxu0 %v940
        %958 = vmatpush.bf16.msra.mxu0 %v939
        %959 = vmatpush.bf16.msra.mxu0 %v938
        %960 = vmatpush.bf16.msra.mxu0 %v937
        %961 = vmatmul.bf16.gmra.mxu0 %v877
        %v962 = vpop.f32.mrf.mxu0
        %v963 = vadd.f32 %v903, %v962
        %v964 = vpop.f32.mrf.mxu0
        %v965 = vadd.f32 %v903, %v964
        %966 = vmatmul.bf16.gmra.mxu0 %v878
        %v967 = vpop.f32.mrf.mxu0
        %v968 = vadd.f32 %v903, %v967
        %v969 = vpop.f32.mrf.mxu0
        %v970 = vadd.f32 %v903, %v969
        %971 = vmatmul.bf16.gmra.mxu0 %v879
        %v972 = vpop.f32.mrf.mxu0
        %v973 = vadd.f32 %v903, %v972
        %v974 = vpop.f32.mrf.mxu0
        %v975 = vadd.f32 %v903, %v974
        %976 = vmatmul.bf16.gmra.mxu0 %v880
        %v977 = vpop.f32.mrf.mxu0
        %v978 = vadd.f32 %v903, %v977
        %v979 = vpop.f32.mrf.mxu0
        %v980 = vadd.f32 %v903, %v979
        %981 = vmatmul.bf16.gmra.mxu0 %v881
        %v982 = vpop.f32.mrf.mxu0
        %v983 = vadd.f32 %v903, %v982
        %v984 = vpop.f32.mrf.mxu0
        %v985 = vadd.f32 %v903, %v984
        %986 = vmatmul.bf16.gmra.mxu0 %v882
        %v987 = vpop.f32.mrf.mxu0
        %v988 = vadd.f32 %v903, %v987
        %v989 = vpop.f32.mrf.mxu0
        %v990 = vadd.f32 %v903, %v989
        %991 = vmatmul.bf16.gmra.mxu0 %v883
        %v992 = vpop.f32.mrf.mxu0
        %v993 = vadd.f32 %v903, %v992
        %v994 = vpop.f32.mrf.mxu0
        %v995 = vadd.f32 %v903, %v994
        %996 = vmatmul.bf16.gmra.mxu0 %v884
        %v997 = vpop.f32.mrf.mxu0
        %v998 = vadd.f32 %v903, %v997
        %v999 = vpop.f32.mrf.mxu0
        %v1000 = vadd.f32 %v903, %v999
        %1001 = vdwg.mxu0
        %v1002 = vmax.f32 %v963, 0.0
        %v1003 = vmax.f32 %v965, 0.0
        %v1004 = vmax.f32 %v968, 0.0
        %v1005 = vmax.f32 %v970, 0.0
        %v1006 = vmax.f32 %v973, 0.0
        %v1007 = vmax.f32 %v975, 0.0
        %v1008 = vmax.f32 %v978, 0.0
        %v1009 = vmax.f32 %v980, 0.0
        %v1010 = vmax.f32 %v983, 0.0
        %v1011 = vmax.f32 %v985, 0.0
        %v1012 = vmax.f32 %v988, 0.0
        %v1013 = vmax.f32 %v990, 0.0
        %v1014 = vmax.f32 %v993, 0.0
        %v1015 = vmax.f32 %v995, 0.0
        %v1016 = vmax.f32 %v998, 0.0
        %v1017 = vmax.f32 %v1000, 0.0
        %v1018 = vpack.c.bf16 %v1002, %v1002
        %v1019 = vpack.c.bf16 %v1003, %v1003
        %v1020 = vpack.c.bf16 %v1004, %v1004
        %v1021 = vpack.c.bf16 %v1005, %v1005
        %v1022 = vpack.c.bf16 %v1006, %v1006
        %v1023 = vpack.c.bf16 %v1007, %v1007
        %v1024 = vpack.c.bf16 %v1008, %v1008
        %v1025 = vpack.c.bf16 %v1009, %v1009
        %v1026 = vpack.c.bf16 %v1010, %v1010
        %v1027 = vpack.c.bf16 %v1011, %v1011
        %v1028 = vpack.c.bf16 %v1012, %v1012
        %v1029 = vpack.c.bf16 %v1013, %v1013
        %v1030 = vpack.c.bf16 %v1014, %v1014
        %v1031 = vpack.c.bf16 %v1015, %v1015
        %v1032 = vpack.c.bf16 %v1016, %v1016
        %v1033 = vpack.c.bf16 %v1017, %v1017
        %1034 = vst [vmem:[%s313] sm:$0xf] %v1018
        %1035 = vst [vmem:[%s313 + $0x4] sm:$0xf] %v1019
        %1036 = vst [vmem:[%s313 + $0x8] sm:$0xf] %v1020
        %1037 = vst [vmem:[%s313 + $0xc] sm:$0xf] %v1021
        %1038 = vst [vmem:[%s313 + $0x10] sm:$0xf] %v1022
        %1039 = vst [vmem:[%s313 + $0x14] sm:$0xf] %v1023
        %1040 = vst [vmem:[%s313 + $0x18] sm:$0xf] %v1024
        %1041 = vst [vmem:[%s313 + $0x1c] sm:$0xf] %v1025
        %1042 = vst [vmem:[%s313 + $0x20] sm:$0xf] %v1026
        %1043 = vst [vmem:[%s313 + $0x24] sm:$0xf] %v1027
        %1044 = vst [vmem:[%s313 + $0x28] sm:$0xf] %v1028
        %1045 = vst [vmem:[%s313 + $0x2c] sm:$0xf] %v1029
        %1046 = vst [vmem:[%s313 + $0x30] sm:$0xf] %v1030
        %1047 = vst [vmem:[%s313 + $0x34] sm:$0xf] %v1031
        %1048 = vst [vmem:[%s313 + $0x38] sm:$0xf] %v1032
        %1049 = vst [vmem:[%s313 + $0x3c] sm:$0xf] %v1033
      $region56: #{linkgin_forward.3} parent=43 // pred_fallthru
        _
      %s1050 = smul.u32 16, %s36
      %p1051 = scmp.lt.s32.totalorder %s1050, 31
      %s1052 = scalar_select %p1051, %s1050, 31
      %s1053 = smul.addr %s1052, 4
      %s1054 = scalar_lea.vmem %s8, %s1053
      // Predicated region
      $region57: #{linkgin_forward.3} parent=43 // pred_check
        %p1055 = pneg %p199
      $region58: #{linkgin_forward.3} parent=43 // pred_check_branch
        %1057 = sbr.rel (%p1055) target = $region60
      $region59: #{linkgin_forward.3} parent=43 // pred_region
        %s1058 = smul.u32 16, %s36
      $region60: #{linkgin_forward.3} parent=43 // pred_fallthru
        _
    $region44: #{linkgin_forward.3} parent=5 // pred_fallthru
      _
    %p1059 = scmp.le.s32.totalorder 2, %s27
    // Predicated region
    $region61: #{linkgin_forward.3} parent=5 // pred_check
      %p1060 = pneg %p1059
    $region62: #{linkgin_forward.3} parent=5 // pred_check_branch
      %1062 = sbr.rel (%p1060) target = $region64
    $region63: #{linkgin_forward.3} parent=5 // pred_region
      %s1063 = ssub.s32 %s27, 2
      // Predicated region
      $region65: #{linkgin_forward.3} parent=63 // pred_check
        %p1064 = pneg %p205
      $region66: #{linkgin_forward.3} parent=63 // pred_check_branch
        %1066 = sbr.rel (%p1064) target = $region68
      $region67: #{linkgin_forward.3} parent=63 // pred_region
        %s1067 = smul.u32 16, %s38
        %p1068 = scmp.lt.s32.totalorder %s1067, 31
        %s1069 = scalar_select %p1068, %s1067, 31
        %s1070 = smul.addr %s1069, 4
        %s1071 = scalar_lea.vmem %s8, %s1070
      $region68: #{linkgin_forward.3} parent=63 // pred_fallthru
        _
    $region64: #{linkgin_forward.3} parent=5 // pred_fallthru
      _
  $region6: #{linkgin_forward.3} parent=0 // loop_footer
    %s31 = sadd.s32 1, %s27
  $region7: #{linkgin_forward.3} parent=0 // loop_footer_branch
    %26 = sbr.rel target = $region3
  $region8: #{linkgin_forward.3} parent=0 // loop_exit
    _

// kernel: linkgin_forward.4
$region0: #{linkgin_forward.4}
  #allocation0 [shape = 'u32[]', space=smem, size = 0x4, offset = 0x4, fixed_abs, tag = 'smem constant byte address 0x4 - core index']
  #allocation1 [shape = 'u32[72,128]{1,0:T(1,128)}', space=vmem, size = 0x9000, scoped, tag = 'internal scratch']
  #allocation2 [shape = 'f32[128,128]{1,0:T(8,128)}', space=vmem, size = 0x10000, scoped, tag = 'scratch operand']
  #allocation3 [shape = 's32[1]{0}', space=sflag, size = 0x4, scoped, tag = 'scoped memory for linkgin_forward.4']
  #allocation4 [shape = 'u8[512]{0}', space=smem, size = 0x200, scoped, tag = 'prefetched SMEM operand 0']
  #allocation5 [shape = 'u8[512]{0}', space=smem, size = 0x200, scoped, tag = 'prefetched SMEM operand 1']
  %s0 = inlined_call_operand.vmem [shape: s32[2], index: 0, kind: input, shape index: {}]
  %s1 = inlined_call_operand.vmem [shape: s32[2], index: 1, kind: input, shape index: {}]
  %s2 = inlined_call_operand.vmem [shape: bf16[256,256], index: 2, kind: input, shape index: {}]
  %s3 = inlined_call_operand.vmem [shape: bf16[256,128], index: 3, kind: input, shape index: {}]
  %s4 = inlined_call_operand.vmem [shape: bf16[128,128], index: 4, kind: input, shape index: {}]
  %s5 = inlined_call_operand.vmem [shape: f32[1,128], index: 5, kind: input, shape index: {}]
  %s6 = inlined_call_operand.vmem [shape: bf16[128,128], index: 6, kind: input, shape index: {}]
  %s7 = inlined_call_operand.vmem [shape: f32[1,128], index: 7, kind: input, shape index: {}]
  %s8 = inlined_call_operand.vmem [shape: f32[256,128], index: 8, kind: output, shape index: {}]
  %s9 = sld [smem:[#allocation0]]
  $region69: #{linkgin_forward.4} parent=0
    _
  %s11 = ssub.s32 1, %s9
  %s12 = scalar_select 0, %s11, %s9
  %s14 = sshll.u32 %s0, 4
  %s15 = int_to_ptr.vmem [resolvable:$true] %s14
  %17 = dma.vmem_to_smem %s15, 16, [#allocation4], [#allocation3]
  %s19 = sshll.u32 %s1, 4
  %s20 = int_to_ptr.vmem [resolvable:$true] %s19
  %22 = dma.vmem_to_smem %s20, 16, [#allocation5], [#allocation3]
  %24 = dma.done [#allocation3], 32
  %25 = sfence
  loop: start=0, step=1, limit=4
  $region2: #{linkgin_forward.4} parent=0 // loop_pre_header
    _
  $region3: #{linkgin_forward.4} parent=0 // loop_header
    %s27 = sphi 0, %s31
    %p28 = scmp.ge.s32.totalorder %s27, 4
    %s34 = sphi 0, %s46
    %s35 = sphi 0, %s42
    %s36 = sphi 0, %s34
    %s37 = sphi 0, %s35
    %s38 = sphi 0, %s36
    %s39 = sphi 0, %s37
    %s55 = sphi 0, %s57
    %s58 = sphi 0, %s55
    %s59 = sphi 0, %s58
    %s75 = sphi 0, %s59
    %s79 = sphi 0, %s79
    %s81 = sphi 0, %s79
    %s82 = sphi 0, %s81
    %s96 = sphi 0, %s82
    %s100 = sphi 0, %s100
    %s102 = sphi 0, %s100
    %s103 = sphi 0, %s102
    %s117 = sphi 0, %s103
    %s121 = sphi 0, %s121
    %s123 = sphi 0, %s121
    %s124 = sphi 0, %s123
    %s138 = sphi 0, %s124
    %s142 = sphi 0, %s142
    %s144 = sphi 0, %s142
    %s145 = sphi 0, %s144
    %s159 = sphi 0, %s145
    %s163 = sphi 0, %s163
    %s165 = sphi 0, %s163
    %s166 = sphi 0, %s165
    %s180 = sphi 0, %s166
    %s186 = sphi 0, %s188
    %s189 = sphi 0, %s186
    %s190 = sphi 0, %s189
    %s206 = sphi 0, %s190
  $region4: #{linkgin_forward.4} parent=0 // loop_header_branch
    %30 = sbr.rel (%p28) target = $region8
  $region5: #{linkgin_forward.4} parent=0 // loop_body
    %s32 = ssub.s32 %s27, 1
    %s33 = ssub.s32 %s27, 2
    %s40 = sadd.s32 1, %s35
    %p41 = scmp.ge.s32.totalorder %s40, 1
    %s42 = scalar_select %p41, 0, %s40
    %s43 = sadd.s32 1, %s34
    %s44 = scalar_select %p41, %s43, %s34
    %p45 = scmp.ge.s32.totalorder %s44, 2
    %s46 = scalar_select %p45, 0, %s44
    %s47 = sadd.s32 %s34, %s35
    %s48 = sld [smem:[#allocation4 + %s47]]
    %s49 = sadd.s32 %s46, %s42
    %s50 = sld [smem:[#allocation4 + %s49]]
    %s51 = ssub.s32 %s34, %s46
    %s52 = ssub.s32 %s48, %s50
    %s53 = sor.u32 %s51, %s52
    %p54 = scmp.eq.s32.totalorder %s53, 0
    %s56 = sadd.s32 %s55, 1
    %s57 = scalar_select %p54, %s55, %s56
    %p60 = pneg %p54
    %p61 = scmp.eq.s32.totalorder %s27, 1
    %p62 = por %p60, %p61
    %p63 = scmp.ne.s32.totalorder %s55, %s58
    %p64 = scmp.eq.s32.totalorder %s27, 0
    %p65 = por %p63, %p64
    %p66 = scmp.ne.s32.totalorder %s55, %s58
    %p67 = scmp.eq.s32.totalorder %s32, 1
    %p68 = por %p66, %p67
    %p69 = scmp.ne.s32.totalorder %s58, %s59
    %p70 = scmp.eq.s32.totalorder %s32, 0
    %p71 = por %p69, %p70
    %p72 = scmp.ne.s32.totalorder %s58, %s59
    %p73 = scmp.eq.s32.totalorder %s33, 1
    %p74 = por %p72, %p73
    %p76 = scmp.ne.s32.totalorder %s59, %s75
    %p77 = scmp.eq.s32.totalorder %s33, 0
    %p78 = por %p76, %p77
    %s80 = sadd.s32 %s79, 1
    %p83 = scmp.eq.s32.totalorder %s27, 1
    %p84 = scmp.ne.s32.totalorder %s79, %s81
    %p85 = scmp.eq.s32.totalorder %s27, 0
    %p86 = por %p84, %p85
    %p87 = scmp.ne.s32.totalorder %s79, %s81
    %p88 = scmp.eq.s32.totalorder %s32, 1
    %p89 = por %p87, %p88
    %p90 = scmp.ne.s32.totalorder %s81, %s82
    %p91 = scmp.eq.s32.totalorder %s32, 0
    %p92 = por %p90, %p91
    %p93 = scmp.ne.s32.totalorder %s81, %s82
    %p94 = scmp.eq.s32.totalorder %s33, 1
    %p95 = por %p93, %p94
    %p97 = scmp.ne.s32.totalorder %s82, %s96
    %p98 = scmp.eq.s32.totalorder %s33, 0
    %p99 = por %p97, %p98
    %s101 = sadd.s32 %s100, 1
    %p104 = scmp.eq.s32.totalorder %s27, 1
    %p105 = scmp.ne.s32.totalorder %s100, %s102
    %p106 = scmp.eq.s32.totalorder %s27, 0
    %p107 = por %p105, %p106
    %p108 = scmp.ne.s32.totalorder %s100, %s102
    %p109 = scmp.eq.s32.totalorder %s32, 1
    %p110 = por %p108, %p109
    %p111 = scmp.ne.s32.totalorder %s102, %s103
    %p112 = scmp.eq.s32.totalorder %s32, 0
    %p113 = por %p111, %p112
    %p114 = scmp.ne.s32.totalorder %s102, %s103
    %p115 = scmp.eq.s32.totalorder %s33, 1
    %p116 = por %p114, %p115
    %p118 = scmp.ne.s32.totalorder %s103, %s117
    %p119 = scmp.eq.s32.totalorder %s33, 0
    %p120 = por %p118, %p119
    %s122 = sadd.s32 %s121, 1
    %p125 = scmp.eq.s32.totalorder %s27, 1
    %p126 = scmp.ne.s32.totalorder %s121, %s123
    %p127 = scmp.eq.s32.totalorder %s27, 0
    %p128 = por %p126, %p127
    %p129 = scmp.ne.s32.totalorder %s121, %s123
    %p130 = scmp.eq.s32.totalorder %s32, 1
    %p131 = por %p129, %p130
    %p132 = scmp.ne.s32.totalorder %s123, %s124
    %p133 = scmp.eq.s32.totalorder %s32, 0
    %p134 = por %p132, %p133
    %p135 = scmp.ne.s32.totalorder %s123, %s124
    %p136 = scmp.eq.s32.totalorder %s33, 1
    %p137 = por %p135, %p136
    %p139 = scmp.ne.s32.totalorder %s124, %s138
    %p140 = scmp.eq.s32.totalorder %s33, 0
    %p141 = por %p139, %p140
    %s143 = sadd.s32 %s142, 1
    %p146 = scmp.eq.s32.totalorder %s27, 1
    %p147 = scmp.ne.s32.totalorder %s142, %s144
    %p148 = scmp.eq.s32.totalorder %s27, 0
    %p149 = por %p147, %p148
    %p150 = scmp.ne.s32.totalorder %s142, %s144
    %p151 = scmp.eq.s32.totalorder %s32, 1
    %p152 = por %p150, %p151
    %p153 = scmp.ne.s32.totalorder %s144, %s145
    %p154 = scmp.eq.s32.totalorder %s32, 0
    %p155 = por %p153, %p154
    %p156 = scmp.ne.s32.totalorder %s144, %s145
    %p157 = scmp.eq.s32.totalorder %s33, 1
    %p158 = por %p156, %p157
    %p160 = scmp.ne.s32.totalorder %s145, %s159
    %p161 = scmp.eq.s32.totalorder %s33, 0
    %p162 = por %p160, %p161
    %s164 = sadd.s32 %s163, 1
    %p167 = scmp.eq.s32.totalorder %s27, 1
    %p168 = scmp.ne.s32.totalorder %s163, %s165
    %p169 = scmp.eq.s32.totalorder %s27, 0
    %p170 = por %p168, %p169
    %p171 = scmp.ne.s32.totalorder %s163, %s165
    %p172 = scmp.eq.s32.totalorder %s32, 1
    %p173 = por %p171, %p172
    %p174 = scmp.ne.s32.totalorder %s165, %s166
    %p175 = scmp.eq.s32.totalorder %s32, 0
    %p176 = por %p174, %p175
    %p177 = scmp.ne.s32.totalorder %s165, %s166
    %p178 = scmp.eq.s32.totalorder %s33, 1
    %p179 = por %p177, %p178
    %p181 = scmp.ne.s32.totalorder %s166, %s180
    %p182 = scmp.eq.s32.totalorder %s33, 0
    %p183 = por %p181, %p182
    %s184 = ssub.s32 %s34, %s46
    %p185 = scmp.eq.s32.totalorder %s184, 0
    %s187 = sadd.s32 %s186, 1
    %s188 = scalar_select %p185, %s186, %s187
    %p191 = pneg %p185
    %p192 = scmp.eq.s32.totalorder %s27, 1
    %p193 = por %p191, %p192
    %p194 = scmp.ne.s32.totalorder %s186, %s189
    %p195 = scmp.eq.s32.totalorder %s27, 0
    %p196 = por %p194, %p195
    %p197 = scmp.ne.s32.totalorder %s186, %s189
    %p198 = scmp.eq.s32.totalorder %s32, 1
    %p199 = por %p197, %p198
    %p200 = scmp.ne.s32.totalorder %s189, %s190
    %p201 = scmp.eq.s32.totalorder %s32, 0
    %p202 = por %p200, %p201
    %p203 = scmp.ne.s32.totalorder %s189, %s190
    %p204 = scmp.eq.s32.totalorder %s33, 1
    %p205 = por %p203, %p204
    %p207 = scmp.ne.s32.totalorder %s190, %s206
    %p208 = scmp.eq.s32.totalorder %s33, 0
    %p209 = por %p207, %p208
    %p210 = scmp.le.s32.totalorder 1, %s27
    %p211 = scmp.lt.s32.totalorder %s27, 3
    %p212 = pnand %p210, %p211
    %p213 = pneg %p212
    // Predicated region
    $region9: #{linkgin_forward.4} parent=5 // pred_check
      _
    $region10: #{linkgin_forward.4} parent=5 // pred_check_branch
      %215 = sbr.rel (%p212) target = $region12
    $region11: #{linkgin_forward.4} parent=5 // pred_region
      %s216 = ssub.s32 %s27, 1
      // Predicated region
      $region13: #{linkgin_forward.4} parent=11 // pred_check
        %p217 = pneg %p92
      $region14: #{linkgin_forward.4} parent=11 // pred_check_branch
        %219 = sbr.rel (%p217) target = $region16
      $region15: #{linkgin_forward.4} parent=11 // pred_region
        _
      $region16: #{linkgin_forward.4} parent=11 // pred_fallthru
        _
      // Predicated region
      $region17: #{linkgin_forward.4} parent=11 // pred_check
        %p220 = pneg %p113
      $region18: #{linkgin_forward.4} parent=11 // pred_check_branch
        %222 = sbr.rel (%p220) target = $region20
      $region19: #{linkgin_forward.4} parent=11 // pred_region
        _
      $region20: #{linkgin_forward.4} parent=11 // pred_fallthru
        _
      // Predicated region
      $region21: #{linkgin_forward.4} parent=11 // pred_check
        %p223 = pneg %p134
      $region22: #{linkgin_forward.4} parent=11 // pred_check_branch
        %225 = sbr.rel (%p223) target = $region24
      $region23: #{linkgin_forward.4} parent=11 // pred_region
        _
      $region24: #{linkgin_forward.4} parent=11 // pred_fallthru
        _
      // Predicated region
      $region25: #{linkgin_forward.4} parent=11 // pred_check
        %p226 = pneg %p155
      $region26: #{linkgin_forward.4} parent=11 // pred_check_branch
        %228 = sbr.rel (%p226) target = $region28
      $region27: #{linkgin_forward.4} parent=11 // pred_region
        _
      $region28: #{linkgin_forward.4} parent=11 // pred_fallthru
        _
      // Predicated region
      $region29: #{linkgin_forward.4} parent=11 // pred_check
        %p229 = pneg %p176
      $region30: #{linkgin_forward.4} parent=11 // pred_check_branch
        %231 = sbr.rel (%p229) target = $region32
      $region31: #{linkgin_forward.4} parent=11 // pred_region
        _
      $region32: #{linkgin_forward.4} parent=11 // pred_fallthru
        _
    $region12: #{linkgin_forward.4} parent=5 // pred_fallthru
      _
    %p232 = scmp.lt.s32.totalorder %s27, 2
    // Predicated region
    $region33: #{linkgin_forward.4} parent=5 // pred_check
      %p233 = pneg %p232
    $region34: #{linkgin_forward.4} parent=5 // pred_check_branch
      %235 = sbr.rel (%p233) target = $region36
    $region35: #{linkgin_forward.4} parent=5 // pred_region
      // Predicated region
      $region37: #{linkgin_forward.4} parent=35 // pred_check
        %p236 = pneg %p65
      $region38: #{linkgin_forward.4} parent=35 // pred_check_branch
        %238 = sbr.rel (%p236) target = $region40
      $region39: #{linkgin_forward.4} parent=35 // pred_region
        %s239 = sadd.s32 %s34, %s35
        %s240 = sld [smem:[#allocation4 + %s239]]
        %s241 = smul.u32 16, %s34
        %s242 = smul.u32 2, %s240
        %p243 = scmp.lt.s32.totalorder %s241, 31
        %s244 = scalar_select %p243, %s241, 31
        %p245 = scmp.lt.s32.totalorder %s242, 1
        %s246 = scalar_select %p245, %s242, 1
        %s247 = smul.addr %s244, 2
        %s248 = sadd.s32 %s246, %s247
        %s249 = smul.addr %s248, 4
        %s250 = scalar_lea.vmem %s2, %s249
        %s251 = sadd.s32 %s34, %s35
        %s252 = sld [smem:[#allocation4 + %s251]]
        %s253 = smul.u32 16, %s34
        %s254 = smul.u32 2, %s252
      $region40: #{linkgin_forward.4} parent=35 // pred_fallthru
        _
    $region36: #{linkgin_forward.4} parent=5 // pred_fallthru
      _
    %p255 = scmp.le.s32.totalorder 1, %s27
    %p256 = scmp.lt.s32.totalorder %s27, 3
    %p257 = pnand %p255, %p256
    %p258 = pneg %p257
    // Predicated region
    $region41: #{linkgin_forward.4} parent=5 // pred_check
      _
    $region42: #{linkgin_forward.4} parent=5 // pred_check_branch
      %260 = sbr.rel (%p257) target = $region44
    $region43: #{linkgin_forward.4} parent=5 // pred_region
      %s261 = ssub.s32 %s27, 1
      %s262 = sadd.s32 %s36, %s37
      %s263 = sld [smem:[#allocation4 + %s262]]
      %s264 = smul.u32 16, %s36
      %s265 = smul.u32 2, %s263
      %p266 = scmp.lt.s32.totalorder %s264, 31
      %s267 = scalar_select %p266, %s264, 31
      %p268 = scmp.lt.s32.totalorder %s265, 1
      %s269 = scalar_select %p268, %s265, 1
      %s270 = smul.addr %s267, 2
      %s271 = sadd.s32 %s269, %s270
      %s272 = smul.addr %s271, 4
      %s273 = scalar_lea.vmem %s2, %s272
      %p274 = pneg %p71
      %p275 = pneg %p68
      %p276 = pneg %p92
      %p277 = pneg %p89
      %p278 = pneg %p113
      %p279 = pneg %p110
      %p280 = pneg %p134
      %p281 = pneg %p131
      %p282 = pneg %p155
      %p283 = pneg %p152
      %p284 = pneg %p176
      %p285 = pneg %p173
      %p286 = pneg %p202
      %p287 = pneg %p199
      %s288 = smul.u32 16, %s36
      %p289 = scmp.lt.s32.totalorder %s288, 31
      %s290 = scalar_select %p289, %s288, 31
      %s291 = smul.addr %s290, 8
      %s292 = scalar_lea.vmem %s8, %s291
      %s293 = sadd.s32 %s36, %s37
      %s294 = sld [smem:[#allocation4 + %s293]]
      %s295 = smul.u32 16, %s36
      %s296 = smul.u32 2, %s294
      %p297 = scmp.lt.s32.totalorder %s295, 31
      %s298 = scalar_select %p297, %s295, 31
      %p299 = scmp.lt.s32.totalorder %s296, 1
      %s300 = scalar_select %p299, %s296, 1
      %s301 = smul.addr %s298, 2
      %s302 = sadd.s32 %s300, %s301
      %s303 = smul.addr %s302, 4
      %s304 = scalar_lea.vmem %s2, %s303
      %s305 = sadd.s32 %s36, %s37
      %s306 = sld [smem:[#allocation4 + %s305]]
      %s307 = smul.u32 16, %s36
      %s308 = smul.u32 2, %s306
      %s309 = smul.u32 16, %s36
      %p310 = scmp.lt.s32.totalorder %s309, 31
      %s311 = scalar_select %p310, %s309, 31
      %s312 = smul.addr %s311, 8
      %s313 = scalar_lea.vmem %s8, %s312
      %s314 = smul.u32 16, %s36
      %p315 = scmp.eq.s32.totalorder %s37, 0
      // Predicated region
      $region45: #{linkgin_forward.4} parent=43 // pred_check
        %p316 = pneg %p315
      $region46: #{linkgin_forward.4} parent=43 // pred_check_branch
        %318 = sbr.rel (%p316) target = $region48
      $region47: #{linkgin_forward.4} parent=43 // pred_region
        %319 = vst [vmem:[#allocation2] sm:$0xff] 0.0
        %320 = vst [vmem:[#allocation2 + $0x8] sm:$0xff] 0.0
        %321 = vst [vmem:[#allocation2 + $0x10] sm:$0xff] 0.0
        %322 = vst [vmem:[#allocation2 + $0x18] sm:$0xff] 0.0
        %323 = vst [vmem:[#allocation2 + $0x20] sm:$0xff] 0.0
        %324 = vst [vmem:[#allocation2 + $0x28] sm:$0xff] 0.0
        %325 = vst [vmem:[#allocation2 + $0x30] sm:$0xff] 0.0
        %326 = vst [vmem:[#allocation2 + $0x38] sm:$0xff] 0.0
        %327 = vst [vmem:[#allocation2 + $0x40] sm:$0xff] 0.0
        %328 = vst [vmem:[#allocation2 + $0x48] sm:$0xff] 0.0
        %329 = vst [vmem:[#allocation2 + $0x50] sm:$0xff] 0.0
        %330 = vst [vmem:[#allocation2 + $0x58] sm:$0xff] 0.0
        %331 = vst [vmem:[#allocation2 + $0x60] sm:$0xff] 0.0
        %332 = vst [vmem:[#allocation2 + $0x68] sm:$0xff] 0.0
        %333 = vst [vmem:[#allocation2 + $0x70] sm:$0xff] 0.0
        %334 = vst [vmem:[#allocation2 + $0x78] sm:$0xff] 0.0
      $region48: #{linkgin_forward.4} parent=43 // pred_fallthru
        _
      %s335 = sld [smem:[#allocation5 + %s36]]
      %p336 = scmp.lt.s32.totalorder %s37, %s335
      // Predicated region
      $region49: #{linkgin_forward.4} parent=43 // pred_check
        %p337 = pneg %p336
      $region50: #{linkgin_forward.4} parent=43 // pred_check_branch
        %339 = sbr.rel (%p337) target = $region52
      $region51: #{linkgin_forward.4} parent=43 // pred_region
        %s340 = sadd.s32 %s36, %s37
        %s341 = sld [smem:[#allocation4 + %s340]]
        %s342 = smul.u32 %s341, 256
        %s343 = sshra.s32 %s342, 3
        %s344 = sand.u32 %s342, 7
        %s345 = smul.addr %s343, 4
        %s346 = scalar_lea.vmem %s3, %s345
        %v347 = vld [vmem:[%s346] sm:$0xf]
        %v348 = vld [vmem:[%s346 + $0x4] sm:$0xf]
        %v349 = vld [vmem:[%s346 + $0x8] sm:$0xf]
        %v350 = vld [vmem:[%s346 + $0xc] sm:$0xf]
        %v351 = vld [vmem:[%s346 + $0x10] sm:$0xf]
        %v352 = vld [vmem:[%s346 + $0x14] sm:$0xf]
        %v353 = vld [vmem:[%s346 + $0x18] sm:$0xf]
        %v354 = vld [vmem:[%s346 + $0x1c] sm:$0xf]
        %v355 = vld [vmem:[%s346 + $0x20] sm:$0xf]
        %v356 = vld [vmem:[%s346 + $0x24] sm:$0xf]
        %v357 = vld [vmem:[%s346 + $0x28] sm:$0xf]
        %v358 = vld [vmem:[%s346 + $0x2c] sm:$0xf]
        %v359 = vld [vmem:[%s346 + $0x30] sm:$0xf]
        %v360 = vld [vmem:[%s346 + $0x34] sm:$0xf]
        %v361 = vld [vmem:[%s346 + $0x38] sm:$0xf]
        %v362 = vld [vmem:[%s346 + $0x3c] sm:$0xf]
        %v363 = vld [vmem:[%s346 + $0x40] sm:$0xf]
        %v364 = vld [vmem:[%s346 + $0x44] sm:$0xf]
        %v365 = vld [vmem:[%s346 + $0x48] sm:$0xf]
        %v366 = vld [vmem:[%s346 + $0x4c] sm:$0xf]
        %v367 = vld [vmem:[%s346 + $0x50] sm:$0xf]
        %v368 = vld [vmem:[%s346 + $0x54] sm:$0xf]
        %v369 = vld [vmem:[%s346 + $0x58] sm:$0xf]
        %v370 = vld [vmem:[%s346 + $0x5c] sm:$0xf]
        %v371 = vld [vmem:[%s346 + $0x60] sm:$0xf]
        %v372 = vld [vmem:[%s346 + $0x64] sm:$0xf]
        %v373 = vld [vmem:[%s346 + $0x68] sm:$0xf]
        %v374 = vld [vmem:[%s346 + $0x6c] sm:$0xf]
        %v375 = vld [vmem:[%s346 + $0x70] sm:$0xf]
        %v376 = vld [vmem:[%s346 + $0x74] sm:$0xf]
        %v377 = vld [vmem:[%s346 + $0x78] sm:$0xf]
        %v378 = vld [vmem:[%s346 + $0x7c] sm:$0xf]
        %v379 = vld [vmem:[#allocation2] sm:$0xff]
        %v380 = vld [vmem:[#allocation2 + $0x8] sm:$0xff]
        %v381 = vld [vmem:[#allocation2 + $0x10] sm:$0xff]
        %v382 = vld [vmem:[#allocation2 + $0x18] sm:$0xff]
        %v383 = vld [vmem:[#allocation2 + $0x20] sm:$0xff]
        %v384 = vld [vmem:[#allocation2 + $0x28] sm:$0xff]
        %v385 = vld [vmem:[#allocation2 + $0x30] sm:$0xff]
        %v386 = vld [vmem:[#allocation2 + $0x38] sm:$0xff]
        %v387 = vld [vmem:[#allocation2 + $0x40] sm:$0xff]
        %v388 = vld [vmem:[#allocation2 + $0x48] sm:$0xff]
        %v389 = vld [vmem:[#allocation2 + $0x50] sm:$0xff]
        %v390 = vld [vmem:[#allocation2 + $0x58] sm:$0xff]
        %v391 = vld [vmem:[#allocation2 + $0x60] sm:$0xff]
        %v392 = vld [vmem:[#allocation2 + $0x68] sm:$0xff]
        %v393 = vld [vmem:[#allocation2 + $0x70] sm:$0xff]
        %v394 = vld [vmem:[#allocation2 + $0x78] sm:$0xff]
        %v395 = vld [vmem:[%s304] sm:$0xff]
        %v396 = vld [vmem:[%s304 + $0x8] sm:$0xff]
        %v397 = vld [vmem:[%s304 + $0x10] sm:$0xff]
        %v398 = vld [vmem:[%s304 + $0x18] sm:$0xff]
        %v399 = vld [vmem:[%s304 + $0x20] sm:$0xff]
        %v400 = vld [vmem:[%s304 + $0x28] sm:$0xff]
        %v401 = vld [vmem:[%s304 + $0x30] sm:$0xff]
        %v402 = vld [vmem:[%s304 + $0x38] sm:$0xff]
        %v403 = vld [vmem:[%s304 + $0x40] sm:$0xff]
        %v404 = vld [vmem:[%s304 + $0x48] sm:$0xff]
        %v405 = vld [vmem:[%s304 + $0x50] sm:$0xff]
        %v406 = vld [vmem:[%s304 + $0x58] sm:$0xff]
        %v407 = vld [vmem:[%s304 + $0x60] sm:$0xff]
        %v408 = vld [vmem:[%s304 + $0x68] sm:$0xff]
        %v409 = vld [vmem:[%s304 + $0x70] sm:$0xff]
        %v410 = vld [vmem:[%s304 + $0x78] sm:$0xff]
        %v427 = vunpack.c.l.b16 %v395
        %v428 = vunpack.c.h.b16 %v395
        %v429 = vunpack.c.l.b16 %v396
        %v430 = vunpack.c.h.b16 %v396
        %v431 = vunpack.c.l.b16 %v397
        %v432 = vunpack.c.h.b16 %v397
        %v433 = vunpack.c.l.b16 %v398
        %v434 = vunpack.c.h.b16 %v398
        %v435 = vunpack.c.l.b16 %v399
        %v436 = vunpack.c.h.b16 %v399
        %v437 = vunpack.c.l.b16 %v400
        %v438 = vunpack.c.h.b16 %v400
        %v439 = vunpack.c.l.b16 %v401
        %v440 = vunpack.c.h.b16 %v401
        %v441 = vunpack.c.l.b16 %v402
        %v442 = vunpack.c.h.b16 %v402
        %v443 = vunpack.c.l.b16 %v403
        %v444 = vunpack.c.h.b16 %v403
        %v445 = vunpack.c.l.b16 %v404
        %v446 = vunpack.c.h.b16 %v404
        %v447 = vunpack.c.l.b16 %v405
        %v448 = vunpack.c.h.b16 %v405
        %v449 = vunpack.c.l.b16 %v406
        %v450 = vunpack.c.h.b16 %v406
        %v451 = vunpack.c.l.b16 %v407
        %v452 = vunpack.c.h.b16 %v407
        %v453 = vunpack.c.l.b16 %v408
        %v454 = vunpack.c.h.b16 %v408
        %v455 = vunpack.c.l.b16 %v409
        %v456 = vunpack.c.h.b16 %v409
        %v457 = vunpack.c.l.b16 %v410
        %v458 = vunpack.c.h.b16 %v410
        %v459 = vpack.c.b16 %v429, %v427
        %v460 = vpack.c.b16 %v430, %v428
        %v461 = vpack.c.b16 %v433, %v431
        %v462 = vpack.c.b16 %v434, %v432
        %v463 = vpack.c.b16 %v437, %v435
        %v464 = vpack.c.b16 %v438, %v436
        %v465 = vpack.c.b16 %v441, %v439
        %v466 = vpack.c.b16 %v442, %v440
        %v467 = vpack.c.b16 %v445, %v443
        %v468 = vpack.c.b16 %v446, %v444
        %v469 = vpack.c.b16 %v449, %v447
        %v470 = vpack.c.b16 %v450, %v448
        %v471 = vpack.c.b16 %v453, %v451
        %v472 = vpack.c.b16 %v454, %v452
        %v473 = vpack.c.b16 %v457, %v455
        %v474 = vpack.c.b16 %v458, %v456
        %v523 = vunpack.c.l.b16 %v347
        %v524 = vunpack.c.l.b16 %v348
        %v525 = vunpack.c.l.b16 %v349
        %v526 = vunpack.c.l.b16 %v350
        %v527 = vunpack.c.l.b16 %v351
        %v528 = vunpack.c.l.b16 %v352
        %v529 = vunpack.c.l.b16 %v353
        %v530 = vunpack.c.l.b16 %v354
        %v531 = vunpack.c.l.b16 %v355
        %v532 = vunpack.c.l.b16 %v356
        %v533 = vunpack.c.l.b16 %v357
        %v534 = vunpack.c.l.b16 %v358
        %v535 = vunpack.c.l.b16 %v359
        %v536 = vunpack.c.l.b16 %v360
        %v537 = vunpack.c.l.b16 %v361
        %v538 = vunpack.c.l.b16 %v362
        %v539 = vunpack.c.l.b16 %v363
        %v540 = vunpack.c.l.b16 %v364
        %v541 = vunpack.c.l.b16 %v365
        %v542 = vunpack.c.l.b16 %v366
        %v543 = vunpack.c.l.b16 %v367
        %v544 = vunpack.c.l.b16 %v368
        %v545 = vunpack.c.l.b16 %v369
        %v546 = vunpack.c.l.b16 %v370
        %v547 = vunpack.c.l.b16 %v371
        %v548 = vunpack.c.l.b16 %v372
        %v549 = vunpack.c.l.b16 %v373
        %v550 = vunpack.c.l.b16 %v374
        %v551 = vunpack.c.l.b16 %v375
        %v552 = vunpack.c.l.b16 %v376
        %v553 = vunpack.c.l.b16 %v377
        %v554 = vunpack.c.l.b16 %v378
        %v555 = vpack.c.b16 %v524, %v523
        %v556 = vpack.c.b16 %v526, %v525
        %v557 = vpack.c.b16 %v528, %v527
        %v558 = vpack.c.b16 %v530, %v529
        %v559 = vpack.c.b16 %v532, %v531
        %v560 = vpack.c.b16 %v534, %v533
        %v561 = vpack.c.b16 %v536, %v535
        %v562 = vpack.c.b16 %v538, %v537
        %v563 = vpack.c.b16 %v540, %v539
        %v564 = vpack.c.b16 %v542, %v541
        %v565 = vpack.c.b16 %v544, %v543
        %v566 = vpack.c.b16 %v546, %v545
        %v567 = vpack.c.b16 %v548, %v547
        %v568 = vpack.c.b16 %v550, %v549
        %v569 = vpack.c.b16 %v552, %v551
        %v570 = vpack.c.b16 %v554, %v553
        %587 = vmatpush.bf16.msra.mxu0 %v562
        %588 = vmatpush.bf16.msra.mxu0 %v561
        %589 = vmatpush.bf16.msra.mxu0 %v560
        %590 = vmatpush.bf16.msra.mxu0 %v559
        %591 = vmatpush.bf16.msra.mxu0 %v558
        %592 = vmatpush.bf16.msra.mxu0 %v557
        %593 = vmatpush.bf16.msra.mxu0 %v556
        %594 = vmatpush.bf16.msra.mxu0 %v555
        %595 = vmatmul.bf16.gmra.mxu0 %v459
        %v596 = vpop.f32.mrf.mxu0
        %v597 = vadd.f32 0.0, %v596
        %v598 = vpop.f32.mrf.mxu0
        %v599 = vadd.f32 0.0, %v598
        %600 = vmatmul.bf16.gmra.mxu0 %v461
        %v601 = vpop.f32.mrf.mxu0
        %v602 = vadd.f32 0.0, %v601
        %v603 = vpop.f32.mrf.mxu0
        %v604 = vadd.f32 0.0, %v603
        %605 = vmatmul.bf16.gmra.mxu0 %v463
        %v606 = vpop.f32.mrf.mxu0
        %v607 = vadd.f32 0.0, %v606
        %v608 = vpop.f32.mrf.mxu0
        %v609 = vadd.f32 0.0, %v608
        %610 = vmatmul.bf16.gmra.mxu0 %v465
        %v611 = vpop.f32.mrf.mxu0
        %v612 = vadd.f32 0.0, %v611
        %v613 = vpop.f32.mrf.mxu0
        %v614 = vadd.f32 0.0, %v613
        %615 = vmatmul.bf16.gmra.mxu0 %v467
        %v616 = vpop.f32.mrf.mxu0
        %v617 = vadd.f32 0.0, %v616
        %v618 = vpop.f32.mrf.mxu0
        %v619 = vadd.f32 0.0, %v618
        %620 = vmatmul.bf16.gmra.mxu0 %v469
        %v621 = vpop.f32.mrf.mxu0
        %v622 = vadd.f32 0.0, %v621
        %v623 = vpop.f32.mrf.mxu0
        %v624 = vadd.f32 0.0, %v623
        %625 = vmatmul.bf16.gmra.mxu0 %v471
        %v626 = vpop.f32.mrf.mxu0
        %v627 = vadd.f32 0.0, %v626
        %v628 = vpop.f32.mrf.mxu0
        %v629 = vadd.f32 0.0, %v628
        %630 = vmatmul.bf16.gmra.mxu0 %v473
        %v631 = vpop.f32.mrf.mxu0
        %v632 = vadd.f32 0.0, %v631
        %v633 = vpop.f32.mrf.mxu0
        %v634 = vadd.f32 0.0, %v633
        %635 = vdwg.mxu0
        %636 = vmatpush.bf16.msra.mxu0 %v570
        %637 = vmatpush.bf16.msra.mxu0 %v569
        %638 = vmatpush.bf16.msra.mxu0 %v568
        %639 = vmatpush.bf16.msra.mxu0 %v567
        %640 = vmatpush.bf16.msra.mxu0 %v566
        %641 = vmatpush.bf16.msra.mxu0 %v565
        %642 = vmatpush.bf16.msra.mxu0 %v564
        %643 = vmatpush.bf16.msra.mxu0 %v563
        %644 = vmatmul.bf16.gmra.mxu0 %v460
        %v645 = vpop.f32.mrf.mxu0
        %v646 = vadd.f32 %v597, %v645
        %v647 = vpop.f32.mrf.mxu0
        %v648 = vadd.f32 %v599, %v647
        %649 = vmatmul.bf16.gmra.mxu0 %v462
        %v650 = vpop.f32.mrf.mxu0
        %v651 = vadd.f32 %v602, %v650
        %v652 = vpop.f32.mrf.mxu0
        %v653 = vadd.f32 %v604, %v652
        %654 = vmatmul.bf16.gmra.mxu0 %v464
        %v655 = vpop.f32.mrf.mxu0
        %v656 = vadd.f32 %v607, %v655
        %v657 = vpop.f32.mrf.mxu0
        %v658 = vadd.f32 %v609, %v657
        %659 = vmatmul.bf16.gmra.mxu0 %v466
        %v660 = vpop.f32.mrf.mxu0
        %v661 = vadd.f32 %v612, %v660
        %v662 = vpop.f32.mrf.mxu0
        %v663 = vadd.f32 %v614, %v662
        %664 = vmatmul.bf16.gmra.mxu0 %v468
        %v665 = vpop.f32.mrf.mxu0
        %v666 = vadd.f32 %v617, %v665
        %v667 = vpop.f32.mrf.mxu0
        %v668 = vadd.f32 %v619, %v667
        %669 = vmatmul.bf16.gmra.mxu0 %v470
        %v670 = vpop.f32.mrf.mxu0
        %v671 = vadd.f32 %v622, %v670
        %v672 = vpop.f32.mrf.mxu0
        %v673 = vadd.f32 %v624, %v672
        %674 = vmatmul.bf16.gmra.mxu0 %v472
        %v675 = vpop.f32.mrf.mxu0
        %v676 = vadd.f32 %v627, %v675
        %v677 = vpop.f32.mrf.mxu0
        %v678 = vadd.f32 %v629, %v677
        %679 = vmatmul.bf16.gmra.mxu0 %v474
        %v680 = vpop.f32.mrf.mxu0
        %v681 = vadd.f32 %v632, %v680
        %v682 = vpop.f32.mrf.mxu0
        %v683 = vadd.f32 %v634, %v682
        %684 = vdwg.mxu0
        %v685 = vadd.f32 %v379, %v646
        %v686 = vadd.f32 %v380, %v648
        %v687 = vadd.f32 %v381, %v651
        %v688 = vadd.f32 %v382, %v653
        %v689 = vadd.f32 %v383, %v656
        %v690 = vadd.f32 %v384, %v658
        %v691 = vadd.f32 %v385, %v661
        %v692 = vadd.f32 %v386, %v663
        %v693 = vadd.f32 %v387, %v666
        %v694 = vadd.f32 %v388, %v668
        %v695 = vadd.f32 %v389, %v671
        %v696 = vadd.f32 %v390, %v673
        %v697 = vadd.f32 %v391, %v676
        %v698 = vadd.f32 %v392, %v678
        %v699 = vadd.f32 %v393, %v681
        %v700 = vadd.f32 %v394, %v683
        %701 = vst [vmem:[#allocation2] sm:$0xff] %v685
        %702 = vst [vmem:[#allocation2 + $0x8] sm:$0xff] %v686
        %703 = vst [vmem:[#allocation2 + $0x10] sm:$0xff] %v687
        %704 = vst [vmem:[#allocation2 + $0x18] sm:$0xff] %v688
        %705 = vst [vmem:[#allocation2 + $0x20] sm:$0xff] %v689
        %706 = vst [vmem:[#allocation2 + $0x28] sm:$0xff] %v690
        %707 = vst [vmem:[#allocation2 + $0x30] sm:$0xff] %v691
        %708 = vst [vmem:[#allocation2 + $0x38] sm:$0xff] %v692
        %709 = vst [vmem:[#allocation2 + $0x40] sm:$0xff] %v693
        %710 = vst [vmem:[#allocation2 + $0x48] sm:$0xff] %v694
        %711 = vst [vmem:[#allocation2 + $0x50] sm:$0xff] %v695
        %712 = vst [vmem:[#allocation2 + $0x58] sm:$0xff] %v696
        %713 = vst [vmem:[#allocation2 + $0x60] sm:$0xff] %v697
        %714 = vst [vmem:[#allocation2 + $0x68] sm:$0xff] %v698
        %715 = vst [vmem:[#allocation2 + $0x70] sm:$0xff] %v699
        %716 = vst [vmem:[#allocation2 + $0x78] sm:$0xff] %v700
      $region52: #{linkgin_forward.4} parent=43 // pred_fallthru
        _
      // Predicated region
      $region53: #{linkgin_forward.4} parent=43 // pred_check
        %p717 = pneg %p315
      $region54: #{linkgin_forward.4} parent=43 // pred_check_branch
        %719 = sbr.rel (%p717) target = $region56
      $region55: #{linkgin_forward.4} parent=43 // pred_region
        %v720 = vld [vmem:[#allocation2] sm:$0xff]
        %v721 = vld [vmem:[#allocation2 + $0x8] sm:$0xff]
        %v722 = vld [vmem:[#allocation2 + $0x10] sm:$0xff]
        %v723 = vld [vmem:[#allocation2 + $0x18] sm:$0xff]
        %v724 = vld [vmem:[#allocation2 + $0x20] sm:$0xff]
        %v725 = vld [vmem:[#allocation2 + $0x28] sm:$0xff]
        %v726 = vld [vmem:[#allocation2 + $0x30] sm:$0xff]
        %v727 = vld [vmem:[#allocation2 + $0x38] sm:$0xff]
        %v728 = vld [vmem:[#allocation2 + $0x40] sm:$0xff]
        %v729 = vld [vmem:[#allocation2 + $0x48] sm:$0xff]
        %v730 = vld [vmem:[#allocation2 + $0x50] sm:$0xff]
        %v731 = vld [vmem:[#allocation2 + $0x58] sm:$0xff]
        %v732 = vld [vmem:[#allocation2 + $0x60] sm:$0xff]
        %v733 = vld [vmem:[#allocation2 + $0x68] sm:$0xff]
        %v734 = vld [vmem:[#allocation2 + $0x70] sm:$0xff]
        %v735 = vld [vmem:[#allocation2 + $0x78] sm:$0xff]
        %v736 = vpack.c.bf16 %v721, %v720
        %v737 = vpack.c.bf16 %v723, %v722
        %v738 = vpack.c.bf16 %v725, %v724
        %v739 = vpack.c.bf16 %v727, %v726
        %v740 = vpack.c.bf16 %v729, %v728
        %v741 = vpack.c.bf16 %v731, %v730
        %v742 = vpack.c.bf16 %v733, %v732
        %v743 = vpack.c.bf16 %v735, %v734
        %v744 = vld [vmem:[%s4] sm:$0xf]
        %v745 = vld [vmem:[%s4 + $0x4] sm:$0xf]
        %v746 = vld [vmem:[%s4 + $0x8] sm:$0xf]
        %v747 = vld [vmem:[%s4 + $0xc] sm:$0xf]
        %v748 = vld [vmem:[%s4 + $0x10] sm:$0xf]
        %v749 = vld [vmem:[%s4 + $0x14] sm:$0xf]
        %v750 = vld [vmem:[%s4 + $0x18] sm:$0xf]
        %v751 = vld [vmem:[%s4 + $0x1c] sm:$0xf]
        %v752 = vld [vmem:[%s4 + $0x20] sm:$0xf]
        %v753 = vld [vmem:[%s4 + $0x24] sm:$0xf]
        %v754 = vld [vmem:[%s4 + $0x28] sm:$0xf]
        %v755 = vld [vmem:[%s4 + $0x2c] sm:$0xf]
        %v756 = vld [vmem:[%s4 + $0x30] sm:$0xf]
        %v757 = vld [vmem:[%s4 + $0x34] sm:$0xf]
        %v758 = vld [vmem:[%s4 + $0x38] sm:$0xf]
        %v759 = vld [vmem:[%s4 + $0x3c] sm:$0xf]
        %v760 = vld [vmem:[%s5] sm:$0x1]
        %v762 = vperm.slane %v760, 0
        %v780 = vunpack.c.l.b16 %v744
        %v781 = vunpack.c.l.b16 %v745
        %v782 = vunpack.c.l.b16 %v746
        %v783 = vunpack.c.l.b16 %v747
        %v784 = vunpack.c.l.b16 %v748
        %v785 = vunpack.c.l.b16 %v749
        %v786 = vunpack.c.l.b16 %v750
        %v787 = vunpack.c.l.b16 %v751
        %v788 = vunpack.c.l.b16 %v752
        %v789 = vunpack.c.l.b16 %v753
        %v790 = vunpack.c.l.b16 %v754
        %v791 = vunpack.c.l.b16 %v755
        %v792 = vunpack.c.l.b16 %v756
        %v793 = vunpack.c.l.b16 %v757
        %v794 = vunpack.c.l.b16 %v758
        %v795 = vunpack.c.l.b16 %v759
        %v796 = vpack.c.b16 %v781, %v780
        %v797 = vpack.c.b16 %v783, %v782
        %v798 = vpack.c.b16 %v785, %v784
        %v799 = vpack.c.b16 %v787, %v786
        %v800 = vpack.c.b16 %v789, %v788
        %v801 = vpack.c.b16 %v791, %v790
        %v802 = vpack.c.b16 %v793, %v792
        %v803 = vpack.c.b16 %v795, %v794
        %812 = vmatpush.bf16.msra.mxu0 %v803
        %813 = vmatpush.bf16.msra.mxu0 %v802
        %814 = vmatpush.bf16.msra.mxu0 %v801
        %815 = vmatpush.bf16.msra.mxu0 %v800
        %816 = vmatpush.bf16.msra.mxu0 %v799
        %817 = vmatpush.bf16.msra.mxu0 %v798
        %818 = vmatpush.bf16.msra.mxu0 %v797
        %819 = vmatpush.bf16.msra.mxu0 %v796
        %820 = vmatmul.bf16.gmra.mxu0 %v736
        %v821 = vpop.f32.mrf.mxu0
        %v822 = vadd.f32 %v762, %v821
        %v823 = vpop.f32.mrf.mxu0
        %v824 = vadd.f32 %v762, %v823
        %825 = vmatmul.bf16.gmra.mxu0 %v737
        %v826 = vpop.f32.mrf.mxu0
        %v827 = vadd.f32 %v762, %v826
        %v828 = vpop.f32.mrf.mxu0
        %v829 = vadd.f32 %v762, %v828
        %830 = vmatmul.bf16.gmra.mxu0 %v738
        %v831 = vpop.f32.mrf.mxu0
        %v832 = vadd.f32 %v762, %v831
        %v833 = vpop.f32.mrf.mxu0
        %v834 = vadd.f32 %v762, %v833
        %835 = vmatmul.bf16.gmra.mxu0 %v739
        %v836 = vpop.f32.mrf.mxu0
        %v837 = vadd.f32 %v762, %v836
        %v838 = vpop.f32.mrf.mxu0
        %v839 = vadd.f32 %v762, %v838
        %840 = vmatmul.bf16.gmra.mxu0 %v740
        %v841 = vpop.f32.mrf.mxu0
        %v842 = vadd.f32 %v762, %v841
        %v843 = vpop.f32.mrf.mxu0
        %v844 = vadd.f32 %v762, %v843
        %845 = vmatmul.bf16.gmra.mxu0 %v741
        %v846 = vpop.f32.mrf.mxu0
        %v847 = vadd.f32 %v762, %v846
        %v848 = vpop.f32.mrf.mxu0
        %v849 = vadd.f32 %v762, %v848
        %850 = vmatmul.bf16.gmra.mxu0 %v742
        %v851 = vpop.f32.mrf.mxu0
        %v852 = vadd.f32 %v762, %v851
        %v853 = vpop.f32.mrf.mxu0
        %v854 = vadd.f32 %v762, %v853
        %855 = vmatmul.bf16.gmra.mxu0 %v743
        %v856 = vpop.f32.mrf.mxu0
        %v857 = vadd.f32 %v762, %v856
        %v858 = vpop.f32.mrf.mxu0
        %v859 = vadd.f32 %v762, %v858
        %860 = vdwg.mxu0
        %v861 = vmax.f32 %v822, 0.0
        %v862 = vmax.f32 %v824, 0.0
        %v863 = vmax.f32 %v827, 0.0
        %v864 = vmax.f32 %v829, 0.0
        %v865 = vmax.f32 %v832, 0.0
        %v866 = vmax.f32 %v834, 0.0
        %v867 = vmax.f32 %v837, 0.0
        %v868 = vmax.f32 %v839, 0.0
        %v869 = vmax.f32 %v842, 0.0
        %v870 = vmax.f32 %v844, 0.0
        %v871 = vmax.f32 %v847, 0.0
        %v872 = vmax.f32 %v849, 0.0
        %v873 = vmax.f32 %v852, 0.0
        %v874 = vmax.f32 %v854, 0.0
        %v875 = vmax.f32 %v857, 0.0
        %v876 = vmax.f32 %v859, 0.0
        %v877 = vpack.c.bf16 %v862, %v861
        %v878 = vpack.c.bf16 %v864, %v863
        %v879 = vpack.c.bf16 %v866, %v865
        %v880 = vpack.c.bf16 %v868, %v867
        %v881 = vpack.c.bf16 %v870, %v869
        %v882 = vpack.c.bf16 %v872, %v871
        %v883 = vpack.c.bf16 %v874, %v873
        %v884 = vpack.c.bf16 %v876, %v875
        %v885 = vld [vmem:[%s6] sm:$0xf]
        %v886 = vld [vmem:[%s6 + $0x4] sm:$0xf]
        %v887 = vld [vmem:[%s6 + $0x8] sm:$0xf]
        %v888 = vld [vmem:[%s6 + $0xc] sm:$0xf]
        %v889 = vld [vmem:[%s6 + $0x10] sm:$0xf]
        %v890 = vld [vmem:[%s6 + $0x14] sm:$0xf]
        %v891 = vld [vmem:[%s6 + $0x18] sm:$0xf]
        %v892 = vld [vmem:[%s6 + $0x1c] sm:$0xf]
        %v893 = vld [vmem:[%s6 + $0x20] sm:$0xf]
        %v894 = vld [vmem:[%s6 + $0x24] sm:$0xf]
        %v895 = vld [vmem:[%s6 + $0x28] sm:$0xf]
        %v896 = vld [vmem:[%s6 + $0x2c] sm:$0xf]
        %v897 = vld [vmem:[%s6 + $0x30] sm:$0xf]
        %v898 = vld [vmem:[%s6 + $0x34] sm:$0xf]
        %v899 = vld [vmem:[%s6 + $0x38] sm:$0xf]
        %v900 = vld [vmem:[%s6 + $0x3c] sm:$0xf]
        %v901 = vld [vmem:[%s7] sm:$0x1]
        %v903 = vperm.slane %v901, 0
        %v921 = vunpack.c.l.b16 %v885
        %v922 = vunpack.c.l.b16 %v886
        %v923 = vunpack.c.l.b16 %v887
        %v924 = vunpack.c.l.b16 %v888
        %v925 = vunpack.c.l.b16 %v889
        %v926 = vunpack.c.l.b16 %v890
        %v927 = vunpack.c.l.b16 %v891
        %v928 = vunpack.c.l.b16 %v892
        %v929 = vunpack.c.l.b16 %v893
        %v930 = vunpack.c.l.b16 %v894
        %v931 = vunpack.c.l.b16 %v895
        %v932 = vunpack.c.l.b16 %v896
        %v933 = vunpack.c.l.b16 %v897
        %v934 = vunpack.c.l.b16 %v898
        %v935 = vunpack.c.l.b16 %v899
        %v936 = vunpack.c.l.b16 %v900
        %v937 = vpack.c.b16 %v922, %v921
        %v938 = vpack.c.b16 %v924, %v923
        %v939 = vpack.c.b16 %v926, %v925
        %v940 = vpack.c.b16 %v928, %v927
        %v941 = vpack.c.b16 %v930, %v929
        %v942 = vpack.c.b16 %v932, %v931
        %v943 = vpack.c.b16 %v934, %v933
        %v944 = vpack.c.b16 %v936, %v935
        %953 = vmatpush.bf16.msra.mxu0 %v944
        %954 = vmatpush.bf16.msra.mxu0 %v943
        %955 = vmatpush.bf16.msra.mxu0 %v942
        %956 = vmatpush.bf16.msra.mxu0 %v941
        %957 = vmatpush.bf16.msra.mxu0 %v940
        %958 = vmatpush.bf16.msra.mxu0 %v939
        %959 = vmatpush.bf16.msra.mxu0 %v938
        %960 = vmatpush.bf16.msra.mxu0 %v937
        %961 = vmatmul.bf16.gmra.mxu0 %v877
        %v962 = vpop.f32.mrf.mxu0
        %v963 = vadd.f32 %v903, %v962
        %v964 = vpop.f32.mrf.mxu0
        %v965 = vadd.f32 %v903, %v964
        %966 = vmatmul.bf16.gmra.mxu0 %v878
        %v967 = vpop.f32.mrf.mxu0
        %v968 = vadd.f32 %v903, %v967
        %v969 = vpop.f32.mrf.mxu0
        %v970 = vadd.f32 %v903, %v969
        %971 = vmatmul.bf16.gmra.mxu0 %v879
        %v972 = vpop.f32.mrf.mxu0
        %v973 = vadd.f32 %v903, %v972
        %v974 = vpop.f32.mrf.mxu0
        %v975 = vadd.f32 %v903, %v974
        %976 = vmatmul.bf16.gmra.mxu0 %v880
        %v977 = vpop.f32.mrf.mxu0
        %v978 = vadd.f32 %v903, %v977
        %v979 = vpop.f32.mrf.mxu0
        %v980 = vadd.f32 %v903, %v979
        %981 = vmatmul.bf16.gmra.mxu0 %v881
        %v982 = vpop.f32.mrf.mxu0
        %v983 = vadd.f32 %v903, %v982
        %v984 = vpop.f32.mrf.mxu0
        %v985 = vadd.f32 %v903, %v984
        %986 = vmatmul.bf16.gmra.mxu0 %v882
        %v987 = vpop.f32.mrf.mxu0
        %v988 = vadd.f32 %v903, %v987
        %v989 = vpop.f32.mrf.mxu0
        %v990 = vadd.f32 %v903, %v989
        %991 = vmatmul.bf16.gmra.mxu0 %v883
        %v992 = vpop.f32.mrf.mxu0
        %v993 = vadd.f32 %v903, %v992
        %v994 = vpop.f32.mrf.mxu0
        %v995 = vadd.f32 %v903, %v994
        %996 = vmatmul.bf16.gmra.mxu0 %v884
        %v997 = vpop.f32.mrf.mxu0
        %v998 = vadd.f32 %v903, %v997
        %v999 = vpop.f32.mrf.mxu0
        %v1000 = vadd.f32 %v903, %v999
        %1001 = vdwg.mxu0
        %1002 = vst [vmem:[%s313] sm:$0xff] %v963
        %1003 = vst [vmem:[%s313 + $0x8] sm:$0xff] %v965
        %1004 = vst [vmem:[%s313 + $0x10] sm:$0xff] %v968
        %1005 = vst [vmem:[%s313 + $0x18] sm:$0xff] %v970
        %1006 = vst [vmem:[%s313 + $0x20] sm:$0xff] %v973
        %1007 = vst [vmem:[%s313 + $0x28] sm:$0xff] %v975
        %1008 = vst [vmem:[%s313 + $0x30] sm:$0xff] %v978
        %1009 = vst [vmem:[%s313 + $0x38] sm:$0xff] %v980
        %1010 = vst [vmem:[%s313 + $0x40] sm:$0xff] %v983
        %1011 = vst [vmem:[%s313 + $0x48] sm:$0xff] %v985
        %1012 = vst [vmem:[%s313 + $0x50] sm:$0xff] %v988
        %1013 = vst [vmem:[%s313 + $0x58] sm:$0xff] %v990
        %1014 = vst [vmem:[%s313 + $0x60] sm:$0xff] %v993
        %1015 = vst [vmem:[%s313 + $0x68] sm:$0xff] %v995
        %1016 = vst [vmem:[%s313 + $0x70] sm:$0xff] %v998
        %1017 = vst [vmem:[%s313 + $0x78] sm:$0xff] %v1000
      $region56: #{linkgin_forward.4} parent=43 // pred_fallthru
        _
      %s1018 = smul.u32 16, %s36
      %p1019 = scmp.lt.s32.totalorder %s1018, 31
      %s1020 = scalar_select %p1019, %s1018, 31
      %s1021 = smul.addr %s1020, 8
      %s1022 = scalar_lea.vmem %s8, %s1021
      // Predicated region
      $region57: #{linkgin_forward.4} parent=43 // pred_check
        %p1023 = pneg %p199
      $region58: #{linkgin_forward.4} parent=43 // pred_check_branch
        %1025 = sbr.rel (%p1023) target = $region60
      $region59: #{linkgin_forward.4} parent=43 // pred_region
        %s1026 = smul.u32 16, %s36
      $region60: #{linkgin_forward.4} parent=43 // pred_fallthru
        _
    $region44: #{linkgin_forward.4} parent=5 // pred_fallthru
      _
    %p1027 = scmp.le.s32.totalorder 2, %s27
    // Predicated region
    $region61: #{linkgin_forward.4} parent=5 // pred_check
      %p1028 = pneg %p1027
    $region62: #{linkgin_forward.4} parent=5 // pred_check_branch
      %1030 = sbr.rel (%p1028) target = $region64
    $region63: #{linkgin_forward.4} parent=5 // pred_region
      %s1031 = ssub.s32 %s27, 2
      // Predicated region
      $region65: #{linkgin_forward.4} parent=63 // pred_check
        %p1032 = pneg %p205
      $region66: #{linkgin_forward.4} parent=63 // pred_check_branch
        %1034 = sbr.rel (%p1032) target = $region68
      $region67: #{linkgin_forward.4} parent=63 // pred_region
        %s1035 = smul.u32 16, %s38
        %p1036 = scmp.lt.s32.totalorder %s1035, 31
        %s1037 = scalar_select %p1036, %s1035, 31
        %s1038 = smul.addr %s1037, 8
        %s1039 = scalar_lea.vmem %s8, %s1038
      $region68: #{linkgin_forward.4} parent=63 // pred_fallthru
        _
    $region64: #{linkgin_forward.4} parent=5 // pred_fallthru
      _
  $region6: #{linkgin_forward.4} parent=0 // loop_footer
    %s31 = sadd.s32 1, %s27
  $region7: #{linkgin_forward.4} parent=0 // loop_footer_branch
    %26 = sbr.rel target = $region3
  $region8: #{linkgin_forward.4} parent=0 // loop_exit
    _

</llo_original>
